<compile_context>
chip_gen: v7x
topology: tpu7x:2x2x1
jax: 0.10.0
libtpu: 0.0.40
codegen_flags: <defaults>
</compile_context>

<pallas_src>
import jax
import jax.numpy as jnp
import numpy as np
from jax.experimental import pallas as pl
from jax.experimental.pallas import tpu as pltpu

# Hyperparameters from ContrastiveCorrelationLoss.__init__ (module has no learnable params).
POINTWISE = True
ZERO_CLAMP = True
STABALIZE = False
NEG_SAMPLES = 5
FEATURE_SAMPLES = 11
POS_INTRA_SHIFT = 0.18
POS_INTER_SHIFT = 0.12
NEG_INTER_SHIFT = 0.46

P_REAL = FEATURE_SAMPLES * FEATURE_SAMPLES   # 121 real sampled pixels
P_PAD = 128                                  # lane-dense padded extent


# ---------------------------------------------------------------------------
# Pallas kernel: per helper-call group, correlation matmuls (bf16 -> f32 acc),
# pointwise re-centering of fd, clamped contrastive loss.
# Inputs are already L2-normalized and zero-padded along P in the wrapper.
# ---------------------------------------------------------------------------
def _corr_loss_kernel(f1_ref, c1_ref, f2_ref, c2_ref, loss_ref, cd_ref):
    g = pl.program_id(0)
    is0 = (g == 0).astype(jnp.float32)
    is1 = (g == 1).astype(jnp.float32)
    # group 0 -> pos_intra, group 1 -> pos_inter, groups >=2 -> negatives
    shift = (POS_INTRA_SHIFT * is0
             + POS_INTER_SHIFT * is1
             + NEG_INTER_SHIFT * (1.0 - is0 - is1))

    f1 = f1_ref[0]   # (B, Pp, Cf) bf16, normalized, rows >= P_REAL are zero
    c1 = c1_ref[0]   # (B, Pp, Cc) bf16
    f2 = f2_ref[0]   # (B, Cf, Pp) bf16, normalized, cols >= P_REAL are zero
    c2 = c2_ref[0]   # (B, Cc, Pp) bf16

    B = f1.shape[0]

    # tensor_correlation: einsum('nchw,ncij->nhwij') on flattened spatial dims.
    # Standard (M,K)x(K,N) per batch on the MXU: bf16 operands, f32 accumulation.
    fd = jnp.einsum('bpc,bcq->bpq', f1, f2, preferred_element_type=jnp.float32)
    cd = jnp.einsum('bpc,bcq->bpq', c1, c2, preferred_element_type=jnp.float32)

    # pointwise=True re-centering.  Padded rows/columns of fd are exactly zero
    # (zero-padded normalized inputs), so plain sums equal masked sums; divide by
    # the REAL extent (121).  The torch code's second `fd - fd.mean() + old_mean`
    # global-mean term is algebraically zero after row-centering, so it is dropped.
    old_mean = jnp.sum(fd) * (1.0 / (B * P_REAL * P_REAL))
    row_mean = jnp.sum(fd, axis=-1, keepdims=True) * (1.0 / P_REAL)
    fd = fd - row_mean + old_mean

    # zero_clamp=True, stabalize=False:  loss = -cd.clamp(0.0) * (fd - shift)
    loss = -jnp.maximum(cd, 0.0) * (fd - shift)

    loss_ref[0] = loss
    cd_ref[0] = cd


def corr_loss_pallas(f1, c1, f2t, c2t):
    """f1,c1: (1,B,Pp,C) bf16; f2t,c2t: (G,B,C,Pp) bf16 -> loss, cd: (G,B,Pp,Pp) f32."""
    G, B, Cf, Pp = f2t.shape
    Cc = c2t.shape[2]

    out_shape = (jax.ShapeDtypeStruct((G, B, Pp, Pp), jnp.float32),
                 jax.ShapeDtypeStruct((G, B, Pp, Pp), jnp.float32))
    return pl.pallas_call(
        _corr_loss_kernel,
        out_shape=out_shape,
        grid=(G,),
        in_specs=[
            # shared LHS: constant block index -> stays VMEM-resident across groups
            pl.BlockSpec((1, B, Pp, Cf), lambda g: (0, 0, 0, 0)),
            pl.BlockSpec((1, B, Pp, Cc), lambda g: (0, 0, 0, 0)),
            # per-group RHS (pre-transposed, lane-dense Pp last)
            pl.BlockSpec((1, B, Cf, Pp), lambda g: (g, 0, 0, 0)),
            pl.BlockSpec((1, B, Cc, Pp), lambda g: (g, 0, 0, 0)),
        ],
        out_specs=(pl.BlockSpec((1, B, Pp, Pp), lambda g: (g, 0, 0, 0)),
                   pl.BlockSpec((1, B, Pp, Pp), lambda g: (g, 0, 0, 0))),
        compiler_params=pltpu.CompilerParams(
            dimension_semantics=("parallel",)),   # groups independent -> megacore on v7x
    )(f1, c1, f2t, c2t)


# ---------------------------------------------------------------------------
# Plain-JAX glue: grid_sample (bilinear, border, align_corners=True), super_perm,
# L2-normalization, zero-padding to P_PAD and layout preparation.
# ---------------------------------------------------------------------------
def grid_sample_border(img, grid):
    """F.grid_sample(img, grid, mode='bilinear', padding_mode='border', align_corners=True).
    img: (N,C,H,W); grid: (N,Ho,Wo,2) with grid[...,0]=x (width), grid[...,1]=y (height)."""
    N, C, H, W = img.shape
    x = grid[..., 0]
    y = grid[..., 1]
    ix = jnp.clip((x + 1.0) * 0.5 * (W - 1), 0.0, W - 1)
    iy = jnp.clip((y + 1.0) * 0.5 * (H - 1), 0.0, H - 1)
    ix0 = jnp.floor(ix)
    iy0 = jnp.floor(iy)
    wx1 = ix - ix0
    wy1 = iy - iy0
    wx0 = 1.0 - wx1
    wy0 = 1.0 - wy1
    ix0i = jnp.clip(ix0.astype(jnp.int32), 0, W - 1)
    ix1i = jnp.clip(ix0.astype(jnp.int32) + 1, 0, W - 1)
    iy0i = jnp.clip(iy0.astype(jnp.int32), 0, H - 1)
    iy1i = jnp.clip(iy0.astype(jnp.int32) + 1, 0, H - 1)

    def gather_one(im, yy, xx):
        return im[:, yy, xx]  # (C, Ho, Wo)

    gather = jax.vmap(gather_one)
    v00 = gather(img, iy0i, ix0i)
    v01 = gather(img, iy0i, ix1i)
    v10 = gather(img, iy1i, ix0i)
    v11 = gather(img, iy1i, ix1i)
    w00 = (wy0 * wx0)[:, None, :, :]
    w01 = (wy0 * wx1)[:, None, :, :]
    w10 = (wy1 * wx0)[:, None, :, :]
    w11 = (wy1 * wx1)[:, None, :, :]
    return v00 * w00 + v01 * w01 + v10 * w10 + v11 * w11


def sample(t, coords):
    # torch: grid_sample(t, coords.permute(0, 2, 1, 3), padding_mode='border', align_corners=True)
    return grid_sample_border(t, jnp.transpose(coords, (0, 2, 1, 3)))


def super_perm(key, size):
    perm = jax.random.permutation(key, size)
    ar = jnp.arange(size, dtype=perm.dtype)
    perm = jnp.where(perm == ar, perm + 1, perm)
    return perm % size


def _l2norm_last(x):
    # F.normalize(t, dim=channel, eps=1e-10); channel is the last axis here.
    # rsqrt on the squared norm (eps^2 clamp) preserves the x / max(||x||, eps) semantics.
    ss = jnp.sum(x * x, axis=-1, keepdims=True)
    return x * jax.lax.rsqrt(jnp.maximum(ss, 1e-20))


def _rows_norm_pad(t):
    # (B, C, S, S) -> normalized, zero-padded (B, P_PAD, C); P row-major over (h, w).
    B, C = t.shape[0], t.shape[1]
    r = jnp.transpose(t.reshape(B, C, P_REAL), (0, 2, 1))   # (B, P, C)
    r = _l2norm_last(r)
    return jnp.pad(r, ((0, 0), (0, P_PAD - P_REAL), (0, 0)))


def prepare_pairs(key, orig_feats, orig_feats_pos, orig_code, orig_code_pos):
    B = orig_feats.shape[0]
    S = FEATURE_SAMPLES
    k1, k2, kperm = jax.random.split(key, 3)
    coords1 = jax.random.uniform(k1, (B, S, S, 2), dtype=jnp.float32) * 2.0 - 1.0
    coords2 = jax.random.uniform(k2, (B, S, S, 2), dtype=jnp.float32) * 2.0 - 1.0

    feats = sample(orig_feats, coords1)          # (B, Cf, S, S)
    code = sample(orig_code, coords1)            # (B, Cc, S, S)
    feats_pos = sample(orig_feats_pos, coords2)
    code_pos = sample(orig_code_pos, coords2)

    f2_list = [feats, feats_pos]
    c2_list = [code, code_pos]
    neg_keys = jax.random.split(kperm, NEG_SAMPLES)
    for i in range(NEG_SAMPLES):
        perm = super_perm(neg_keys[i], B)
        f2_list.append(sample(orig_feats[perm], coords2))
        c2_list.append(sample(orig_code[perm], coords2))

    # shared LHS: normalized once, NOT broadcast over G; bf16 for MXU + half DMA bytes
    f1 = _rows_norm_pad(feats)[None].astype(jnp.bfloat16)     # (1, B, Pp, Cf)
    c1 = _rows_norm_pad(code)[None].astype(jnp.bfloat16)      # (1, B, Pp, Cc)

    # per-group RHS: normalized, then transposed to (G, B, C, Pp) (lane-dense Pp)
    f2 = jnp.stack([_rows_norm_pad(t) for t in f2_list], axis=0)   # (G, B, Pp, Cf) f32
    c2 = jnp.stack([_rows_norm_pad(t) for t in c2_list], axis=0)   # (G, B, Pp, Cc) f32
    f2t = jnp.transpose(f2, (0, 1, 3, 2)).astype(jnp.bfloat16)     # (G, B, Cf, Pp)
    c2t = jnp.transpose(c2, (0, 1, 3, 2)).astype(jnp.bfloat16)     # (G, B, Cc, Pp)
    return f1, c1, f2t, c2t


def contrastive_correlation_loss(key, orig_feats, orig_feats_pos, orig_code, orig_code_pos):
    S = FEATURE_SAMPLES
    B = orig_feats.shape[0]
    f1, c1, f2t, c2t = prepare_pairs(key, orig_feats, orig_feats_pos, orig_code, orig_code_pos)
    loss_p, cd_p = corr_loss_pallas(f1, c1, f2t, c2t)          # (G, B, Pp, Pp)
    G = loss_p.shape[0]
    loss5 = loss_p[:, :, :P_REAL, :P_REAL].reshape(G, B, S, S, S, S)
    cd5 = cd_p[:, :, :P_REAL, :P_REAL].reshape(G, B, S, S, S, S)
    pos_intra_loss = jnp.mean(loss5[0])
    pos_intra_cd = cd5[0]
    pos_inter_loss = jnp.mean(loss5[1])
    pos_inter_cd = cd5[1]
    neg_inter_loss = loss5[2:].reshape(NEG_SAMPLES * B, S, S, S, S)
    neg_inter_cd = cd5[2:].reshape(NEG_SAMPLES * B, S, S, S, S)
    return (pos_intra_loss, pos_intra_cd, pos_inter_loss, pos_inter_cd,
            neg_inter_loss, neg_inter_cd)


# ---------------------------------------------------------------------------
# Pure-JAX reference of the helper math (torch semantics, incl. the redundant
# second global-mean term) for a sanity check of the Pallas kernel.
# ---------------------------------------------------------------------------
def _corr_loss_ref(f1, f2, c1, c2):
    """f1,c1: (B,P,C) normalized; f2,c2: (G,B,P,C) normalized. Returns (G,B,P,P)."""
    G = f2.shape[0]
    shifts = jnp.array([POS_INTRA_SHIFT, POS_INTER_SHIFT] + [NEG_INTER_SHIFT] * (G - 2),
                       jnp.float32)[:, None, None, None]
    hi = jax.lax.Precision.HIGHEST
    fd = jnp.einsum('bpc,gbqc->gbpq', f1, f2, precision=hi)
    cd = jnp.einsum('bpc,gbqc->gbpq', c1, c2, precision=hi)
    old = jnp.mean(fd, axis=(1, 2, 3), keepdims=True)
    fd = fd - jnp.mean(fd, axis=-1, keepdims=True)
    fd = fd - jnp.mean(fd, axis=(1, 2, 3), keepdims=True) + old
    loss = -jnp.maximum(cd, 0.0) * (fd - shifts)
    return loss, cd


if __name__ == "__main__":
    key = jax.random.PRNGKey(0)
    kf, kfp, kc, kcp, kfwd = jax.random.split(key, 5)
    B, Cf, Cc, H, W = 2, 32, 16, 16, 16
    orig_feats = jax.random.normal(kf, (B, Cf, H, W), jnp.float32)
    orig_feats_pos = jax.random.normal(kfp, (B, Cf, H, W), jnp.float32)
    orig_code = jax.random.normal(kc, (B, Cc, H, W), jnp.float32)
    orig_code_pos = jax.random.normal(kcp, (B, Cc, H, W), jnp.float32)

    outs = contrastive_correlation_loss(kfwd, orig_feats, orig_feats_pos,
                                        orig_code, orig_code_pos)
    outs = jax.block_until_ready(outs)

    # Sanity check of the Pallas kernel against a pure-JAX reference operating on
    # the same (bf16-rounded, normalized) operands.
    f1, c1, f2t, c2t = prepare_pairs(kfwd, orig_feats, orig_feats_pos, orig_code, orig_code_pos)
    loss_k, cd_k = jax.block_until_ready(corr_loss_pallas(f1, c1, f2t, c2t))
    loss_k = np.asarray(loss_k[:, :, :P_REAL, :P_REAL])
    cd_k = np.asarray(cd_k[:, :, :P_REAL, :P_REAL])

    f1r = f1[0, :, :P_REAL, :].astype(jnp.float32)                                  # (B,P,Cf)
    c1r = c1[0, :, :P_REAL, :].astype(jnp.float32)                                  # (B,P,Cc)
    f2r = jnp.transpose(f2t, (0, 1, 3, 2))[:, :, :P_REAL, :].astype(jnp.float32)    # (G,B,P,Cf)
    c2r = jnp.transpose(c2t, (0, 1, 3, 2))[:, :, :P_REAL, :].astype(jnp.float32)    # (G,B,P,Cc)
    loss_r, cd_r = _corr_loss_ref(f1r, f2r, c1r, c2r)

    np.testing.assert_allclose(cd_k, np.asarray(cd_r), atol=2e-2, rtol=0)
    np.testing.assert_allclose(loss_k, np.asarray(loss_r), atol=2e-2, rtol=0)
    assert all(bool(jnp.all(jnp.isfinite(o))) for o in outs)

    print("KERNEL_OK")
</pallas_src>

<mosaic_0001>
module attributes {stable_mosaic.version = 11 : i64} {
  func.func @_corr_loss_kernel(%arg0: i32, %arg1: memref<1x2x128x32xbf16, #tpu.memory_space<vmem>>, %arg2: memref<1x2x128x16xbf16, #tpu.memory_space<vmem>>, %arg3: memref<1x2x32x128xbf16, #tpu.memory_space<vmem>>, %arg4: memref<1x2x16x128xbf16, #tpu.memory_space<vmem>>, %arg5: memref<1x2x128x128xf32, #tpu.memory_space<vmem>>, %arg6: memref<1x2x128x128xf32, #tpu.memory_space<vmem>>) attributes {dimension_semantics = [#tpu.dimension_semantics<parallel>], iteration_bounds = array<i64: 7>, scalar_prefetch = 0 : i64, scratch_operands = 0 : i64, tpu.core_type = #tpu.core_type<tc>, window_params = [{pipeline_mode = #tpu.pipeline_mode<synchronous>, transform_indices = @transform_0, window_bounds = array<i64: 1, 2, 128, 32>}, {pipeline_mode = #tpu.pipeline_mode<synchronous>, transform_indices = @transform_1, window_bounds = array<i64: 1, 2, 128, 16>}, {transform_indices = @transform_2, window_bounds = array<i64: 1, 2, 32, 128>}, {transform_indices = @transform_3, window_bounds = array<i64: 1, 2, 16, 128>}, {transform_indices = @transform_4, window_bounds = array<i64: 1, 2, 128, 128>}, {transform_indices = @transform_5, window_bounds = array<i64: 1, 2, 128, 128>}]} {
    %c0_i32 = arith.constant 0 : i32
    %0 = arith.cmpi eq, %arg0, %c0_i32 : i32
    %1 = arith.extui %0 : i1 to i32
    %2 = arith.sitofp %1 : i32 to f32
    %c1_i32 = arith.constant 1 : i32
    %3 = arith.cmpi eq, %arg0, %c1_i32 : i32
    %4 = arith.extui %3 : i1 to i32
    %5 = arith.sitofp %4 : i32 to f32
    %cst = arith.constant 1.800000e-01 : f32
    %6 = arith.mulf %cst, %2 : f32
    %cst_0 = arith.constant 1.200000e-01 : f32
    %7 = arith.mulf %cst_0, %5 : f32
    %8 = arith.addf %6, %7 : f32
    %cst_1 = arith.constant 1.000000e+00 : f32
    %9 = arith.subf %cst_1, %2 : f32
    %10 = arith.subf %9, %5 : f32
    %cst_2 = arith.constant 4.600000e-01 : f32
    %11 = arith.mulf %cst_2, %10 : f32
    %12 = arith.addf %8, %11 : f32
    %c0 = arith.constant 0 : index
    %c0_3 = arith.constant 0 : index
    %c0_4 = arith.constant 0 : index
    %c0_5 = arith.constant 0 : index
    %13 = vector.load %arg1[%c0, %c0_3, %c0_4, %c0_5] : memref<1x2x128x32xbf16, #tpu.memory_space<vmem>>, vector<1x2x128x32xbf16>
    %14 = vector.shape_cast %13 : vector<1x2x128x32xbf16> to vector<2x128x32xbf16>
    %c0_6 = arith.constant 0 : index
    %c0_7 = arith.constant 0 : index
    %c0_8 = arith.constant 0 : index
    %c0_9 = arith.constant 0 : index
    %15 = vector.load %arg2[%c0_6, %c0_7, %c0_8, %c0_9] : memref<1x2x128x16xbf16, #tpu.memory_space<vmem>>, vector<1x2x128x16xbf16>
    %16 = vector.shape_cast %15 : vector<1x2x128x16xbf16> to vector<2x128x16xbf16>
    %c0_10 = arith.constant 0 : index
    %c0_11 = arith.constant 0 : index
    %c0_12 = arith.constant 0 : index
    %c0_13 = arith.constant 0 : index
    %17 = vector.load %arg3[%c0_10, %c0_11, %c0_12, %c0_13] : memref<1x2x32x128xbf16, #tpu.memory_space<vmem>>, vector<1x2x32x128xbf16>
    %18 = vector.shape_cast %17 : vector<1x2x32x128xbf16> to vector<2x32x128xbf16>
    %c0_14 = arith.constant 0 : index
    %c0_15 = arith.constant 0 : index
    %c0_16 = arith.constant 0 : index
    %c0_17 = arith.constant 0 : index
    %19 = vector.load %arg4[%c0_14, %c0_15, %c0_16, %c0_17] : memref<1x2x16x128xbf16, #tpu.memory_space<vmem>>, vector<1x2x16x128xbf16>
    %20 = vector.shape_cast %19 : vector<1x2x16x128xbf16> to vector<2x16x128xbf16>
    "tpu.trace_start"() <{level = 10 : i32, message = "bpc,bcq->bpq"}> : () -> ()
    %cst_18 = arith.constant dense<0.000000e+00> : vector<2x128x128xf32>
    %21 = tpu.matmul %14, %18, %cst_18 {dimension_numbers = #tpu.dot_dimension_numbers<[2], [1], [1], [2], [0, 0, 0, 1, 1, 2], [0], [0]>} : vector<2x128x32xbf16>, vector<2x32x128xbf16>, vector<2x128x128xf32> -> vector<2x128x128xf32>
    %cst_19 = arith.constant dense<0.000000e+00> : vector<2x128x128xf32>
    %22 = tpu.matmul %16, %20, %cst_19 {dimension_numbers = #tpu.dot_dimension_numbers<[2], [1], [1], [2], [0, 0, 0, 1, 1, 2], [0], [0]>} : vector<2x128x16xbf16>, vector<2x16x128xbf16>, vector<2x128x128xf32> -> vector<2x128x128xf32>
    "tpu.trace_stop"() : () -> ()
    %23 = vector.shape_cast %21 : vector<2x128x128xf32> to vector<1x2x128x128xf32>
    %cst_20 = arith.constant dense<0.000000e+00> : vector<1xf32>
    %24 = vector.multi_reduction <add>, %23, %cst_20 [1, 2, 3] : vector<1x2x128x128xf32> to vector<1xf32>
    %25 = vector.shape_cast %24 : vector<1xf32> to vector<1x1x1x1xf32>
    %26 = vector.extract %25[0, 0, 0, 0] : f32 from vector<1x1x1x1xf32>
    %cst_21 = arith.constant 3.41506711E-5 : f32
    %27 = arith.mulf %26, %cst_21 : f32
    %cst_22 = arith.constant dense<0.000000e+00> : vector<2x128xf32>
    %28 = vector.multi_reduction <add>, %21, %cst_22 [2] : vector<2x128x128xf32> to vector<2x128xf32>
    %29 = vector.shape_cast %28 : vector<2x128xf32> to vector<2x128x1xf32>
    %cst_23 = arith.constant 0.00826446246 : f32
    %30 = vector.broadcast %cst_23 : f32 to vector<2x128x1xf32>
    %31 = arith.mulf %29, %30 : vector<2x128x1xf32>
    %32 = vector.broadcast %31 : vector<2x128x1xf32> to vector<2x128x128xf32>
    %33 = arith.subf %21, %32 : vector<2x128x128xf32>
    %34 = vector.broadcast %27 : f32 to vector<2x128x128xf32>
    %35 = arith.addf %33, %34 : vector<2x128x128xf32>
    %cst_24 = arith.constant 0.000000e+00 : f32
    %36 = vector.broadcast %cst_24 : f32 to vector<2x128x128xf32>
    %37 = arith.maximumf %22, %36 : vector<2x128x128xf32>
    %cst_25 = arith.constant 0.000000e+00 : f32
    %38 = vector.broadcast %cst_25 : f32 to vector<2x128x128xf32>
    %39 = arith.subf %38, %37 : vector<2x128x128xf32>
    %40 = vector.broadcast %12 : f32 to vector<2x128x128xf32>
    %41 = arith.subf %35, %40 : vector<2x128x128xf32>
    %42 = arith.mulf %39, %41 : vector<2x128x128xf32>
    %c0_26 = arith.constant 0 : index
    %c0_27 = arith.constant 0 : index
    %c0_28 = arith.constant 0 : index
    %c0_29 = arith.constant 0 : index
    %43 = vector.load %arg5[%c0_26, %c0_27, %c0_28, %c0_29] : memref<1x2x128x128xf32, #tpu.memory_space<vmem>>, vector<1x2x128x128xf32>
    %44 = vector.shape_cast %43 : vector<1x2x128x128xf32> to vector<2x128x128xf32>
    %45 = vector.shape_cast %42 : vector<2x128x128xf32> to vector<1x2x128x128xf32>
    tpu.vector_store %arg5[%c0_26, %c0_27, %c0_28, %c0_29], %45 {strides = array<i32>} : memref<1x2x128x128xf32, #tpu.memory_space<vmem>>, vector<1x2x128x128xf32>,
    %c0_30 = arith.constant 0 : index
    %c0_31 = arith.constant 0 : index
    %c0_32 = arith.constant 0 : index
    %c0_33 = arith.constant 0 : index
    %46 = vector.load %arg6[%c0_30, %c0_31, %c0_32, %c0_33] : memref<1x2x128x128xf32, #tpu.memory_space<vmem>>, vector<1x2x128x128xf32>
    %47 = vector.shape_cast %46 : vector<1x2x128x128xf32> to vector<2x128x128xf32>
    %48 = vector.shape_cast %22 : vector<2x128x128xf32> to vector<1x2x128x128xf32>
    tpu.vector_store %arg6[%c0_30, %c0_31, %c0_32, %c0_33], %48 {strides = array<i32>} : memref<1x2x128x128xf32, #tpu.memory_space<vmem>>, vector<1x2x128x128xf32>,
    return
  }
  func.func @transform_0(%arg0: i32) -> (i32, i32, i32, i32) {
    %c0_i32 = arith.constant 0 : i32
    %c0_i32_0 = arith.constant 0 : i32
    %c0_i32_1 = arith.constant 0 : i32
    %c0_i32_2 = arith.constant 0 : i32
    %c0_i32_3 = arith.constant 0 : i32
    return %c0_i32, %c0_i32_0, %c0_i32_1, %c0_i32_2 : i32, i32, i32, i32
  }
  func.func @transform_1(%arg0: i32) -> (i32, i32, i32, i32) {
    %c0_i32 = arith.constant 0 : i32
    %c0_i32_0 = arith.constant 0 : i32
    %c0_i32_1 = arith.constant 0 : i32
    %c0_i32_2 = arith.constant 0 : i32
    %c0_i32_3 = arith.constant 0 : i32
    return %c0_i32, %c0_i32_0, %c0_i32_1, %c0_i32_2 : i32, i32, i32, i32
  }
  func.func @transform_2(%arg0: i32) -> (i32, i32, i32, i32) {
    %c0_i32 = arith.constant 0 : i32
    %c0_i32_0 = arith.constant 0 : i32
    %c0_i32_1 = arith.constant 0 : i32
    %c0_i32_2 = arith.constant 0 : i32
    return %arg0, %c0_i32, %c0_i32_0, %c0_i32_1 : i32, i32, i32, i32
  }
  func.func @transform_3(%arg0: i32) -> (i32, i32, i32, i32) {
    %c0_i32 = arith.constant 0 : i32
    %c0_i32_0 = arith.constant 0 : i32
    %c0_i32_1 = arith.constant 0 : i32
    %c0_i32_2 = arith.constant 0 : i32
    return %arg0, %c0_i32, %c0_i32_0, %c0_i32_1 : i32, i32, i32, i32
  }
  func.func @transform_4(%arg0: i32) -> (i32, i32, i32, i32) {
    %c0_i32 = arith.constant 0 : i32
    %c0_i32_0 = arith.constant 0 : i32
    %c0_i32_1 = arith.constant 0 : i32
    %c0_i32_2 = arith.constant 0 : i32
    return %arg0, %c0_i32, %c0_i32_0, %c0_i32_1 : i32, i32, i32, i32
  }
  func.func @transform_5(%arg0: i32) -> (i32, i32, i32, i32) {
    %c0_i32 = arith.constant 0 : i32
    %c0_i32_0 = arith.constant 0 : i32
    %c0_i32_1 = arith.constant 0 : i32
    %c0_i32_2 = arith.constant 0 : i32
    return %arg0, %c0_i32, %c0_i32_0, %c0_i32_1 : i32, i32, i32, i32
  }
}

</mosaic_0001>

<llo_original>
// kernel: tpu_custom_call.1
$region0: #{tpu_custom_call.1}
  #allocation0 [shape = 'u32[]', space=smem, size = 0x4, offset = 0x4, fixed_abs, tag = 'smem constant byte address 0x4 - core index']
  #allocation1 [shape = 'u32[144,128]{1,0:T(1,128)}', space=vmem, size = 0x12000, scoped, tag = 'internal scratch']
  %s0 = inlined_call_operand.vmem [shape: bf16[1,2,128,32], index: 0, kind: input, shape index: {}]
  %s1 = inlined_call_operand.vmem [shape: bf16[1,2,128,16], index: 1, kind: input, shape index: {}]
  %s2 = inlined_call_operand.vmem [shape: bf16[7,2,32,128], index: 2, kind: input, shape index: {}]
  %s3 = inlined_call_operand.hbm [shape: bf16[7,2,16,128], index: 3, kind: input, shape index: {}]
  %s4 = inlined_call_operand.hbm [shape: f32[7,2,128,128], index: 4, kind: output, shape index: {0}]
  %s5 = inlined_call_operand.hbm [shape: f32[7,2,128,128], index: 5, kind: output, shape index: {1}]
  %6 = xla_tuple %s4, %s5
  %s7 = sld [smem:[#allocation0]]
  $region61: #{tpu_custom_call.1} parent=0
    _
  %s9 = ssub.s32 1, %s7
  %s10 = scalar_select 0, %s9, %s7
  $region1: #{tpu_custom_call.1} parent=0
    #allocation2 [shape = 'u8[16384]{0}', space=vmem, size = 0x4000, scoped, tag = 'input window, operand 3']
    #allocation3 [shape = 's32[2]{0}', space=sflag, size = 0x8, scoped, tag = 'scoped memory for tpu_custom_call.1']
    #allocation4 [shape = 's32[2]{0}', space=sflag, size = 0x8, scoped, tag = 'scoped memory for tpu_custom_call.1']
    #allocation5 [shape = 'u8[262144]{0}', space=vmem, size = 0x40000, scoped, tag = 'output window, operand 0']
    #allocation6 [shape = 'u8[262144]{0}', space=vmem, size = 0x40000, scoped, tag = 'output window, operand 1']
    #allocation7 [shape = 's32[2]{0}', space=sflag, size = 0x8, scoped, tag = 'scoped memory for tpu_custom_call.1']
    %11 = vsyncpa [#allocation3], 0
    %s12 = scalar_lea.sflag [#allocation3], 1
    %13 = vsyncpa %s12, 0
    %14 = vsyncpa [#allocation4], 0
    %s15 = scalar_lea.sflag [#allocation4], 1
    %16 = vsyncpa %s15, 0
    %17 = vsyncpa [#allocation7], 0
    %s18 = scalar_lea.sflag [#allocation7], 1
    %19 = vsyncpa %s18, 0
    loop: start=0, step=1, limit=9
    $region2: #{tpu_custom_call.1} parent=1 // loop_pre_header
      _
    $region3: #{tpu_custom_call.1} parent=1 // loop_header
      %s21 = sphi 0, %s25
      %p22 = scmp.ge.s32.totalorder %s21, 9
      %s29 = sphi 0, %s29
      %s31 = sphi 0, %s29
      %s32 = sphi 0, %s31
      %s46 = sphi 0, %s32
      %s50 = sphi 0, %s50
      %s52 = sphi 0, %s50
      %s53 = sphi 0, %s52
      %s67 = sphi 0, %s53
      %s73 = sphi 0, %s75
      %s76 = sphi 0, %s73
      %s77 = sphi 0, %s76
      %s93 = sphi 0, %s77
      %s99 = sphi 0, %s101
      %s102 = sphi 0, %s99
      %s103 = sphi 0, %s102
      %s119 = sphi 0, %s103
      %s125 = sphi 0, %s127
      %s128 = sphi 0, %s125
      %s129 = sphi 0, %s128
      %s145 = sphi 0, %s129
      %s151 = sphi 0, %s153
      %s154 = sphi 0, %s151
      %s155 = sphi 0, %s154
      %s171 = sphi 0, %s155
    $region4: #{tpu_custom_call.1} parent=1 // loop_header_branch
      %24 = sbr.rel (%p22) target = $region8
    $region5: #{tpu_custom_call.1} parent=1 // loop_body
      %s26 = ssub.s32 %s21, 1
      %s27 = ssub.s32 %s21, 2
      %s28 = sadd.s32 %s21, 1
      %s30 = sadd.s32 %s29, 1
      %p33 = scmp.eq.s32.totalorder %s21, 6
      %p34 = scmp.ne.s32.totalorder %s29, %s31
      %p35 = scmp.eq.s32.totalorder %s21, 0
      %p36 = por %p34, %p35
      %p37 = scmp.ne.s32.totalorder %s29, %s31
      %p38 = scmp.eq.s32.totalorder %s26, 6
      %p39 = por %p37, %p38
      %p40 = scmp.ne.s32.totalorder %s31, %s32
      %p41 = scmp.eq.s32.totalorder %s26, 0
      %p42 = por %p40, %p41
      %p43 = scmp.ne.s32.totalorder %s31, %s32
      %p44 = scmp.eq.s32.totalorder %s27, 6
      %p45 = por %p43, %p44
      %p47 = scmp.ne.s32.totalorder %s32, %s46
      %p48 = scmp.eq.s32.totalorder %s27, 0
      %p49 = por %p47, %p48
      %s51 = sadd.s32 %s50, 1
      %p54 = scmp.eq.s32.totalorder %s21, 6
      %p55 = scmp.ne.s32.totalorder %s50, %s52
      %p56 = scmp.eq.s32.totalorder %s21, 0
      %p57 = por %p55, %p56
      %p58 = scmp.ne.s32.totalorder %s50, %s52
      %p59 = scmp.eq.s32.totalorder %s26, 6
      %p60 = por %p58, %p59
      %p61 = scmp.ne.s32.totalorder %s52, %s53
      %p62 = scmp.eq.s32.totalorder %s26, 0
      %p63 = por %p61, %p62
      %p64 = scmp.ne.s32.totalorder %s52, %s53
      %p65 = scmp.eq.s32.totalorder %s27, 6
      %p66 = por %p64, %p65
      %p68 = scmp.ne.s32.totalorder %s53, %s67
      %p69 = scmp.eq.s32.totalorder %s27, 0
      %p70 = por %p68, %p69
      %s71 = ssub.s32 %s21, %s28
      %p72 = scmp.eq.s32.totalorder %s71, 0
      %s74 = sadd.s32 %s73, 1
      %s75 = scalar_select %p72, %s73, %s74
      %p78 = pneg %p72
      %p79 = scmp.eq.s32.totalorder %s21, 6
      %p80 = por %p78, %p79
      %p81 = scmp.ne.s32.totalorder %s73, %s76
      %p82 = scmp.eq.s32.totalorder %s21, 0
      %p83 = por %p81, %p82
      %p84 = scmp.ne.s32.totalorder %s73, %s76
      %p85 = scmp.eq.s32.totalorder %s26, 6
      %p86 = por %p84, %p85
      %p87 = scmp.ne.s32.totalorder %s76, %s77
      %p88 = scmp.eq.s32.totalorder %s26, 0
      %p89 = por %p87, %p88
      %p90 = scmp.ne.s32.totalorder %s76, %s77
      %p91 = scmp.eq.s32.totalorder %s27, 6
      %p92 = por %p90, %p91
      %p94 = scmp.ne.s32.totalorder %s77, %s93
      %p95 = scmp.eq.s32.totalorder %s27, 0
      %p96 = por %p94, %p95
      %s97 = ssub.s32 %s21, %s28
      %p98 = scmp.eq.s32.totalorder %s97, 0
      %s100 = sadd.s32 %s99, 1
      %s101 = scalar_select %p98, %s99, %s100
      %p104 = pneg %p98
      %p105 = scmp.eq.s32.totalorder %s21, 6
      %p106 = por %p104, %p105
      %p107 = scmp.ne.s32.totalorder %s99, %s102
      %p108 = scmp.eq.s32.totalorder %s21, 0
      %p109 = por %p107, %p108
      %p110 = scmp.ne.s32.totalorder %s99, %s102
      %p111 = scmp.eq.s32.totalorder %s26, 6
      %p112 = por %p110, %p111
      %p113 = scmp.ne.s32.totalorder %s102, %s103
      %p114 = scmp.eq.s32.totalorder %s26, 0
      %p115 = por %p113, %p114
      %p116 = scmp.ne.s32.totalorder %s102, %s103
      %p117 = scmp.eq.s32.totalorder %s27, 6
      %p118 = por %p116, %p117
      %p120 = scmp.ne.s32.totalorder %s103, %s119
      %p121 = scmp.eq.s32.totalorder %s27, 0
      %p122 = por %p120, %p121
      %s123 = ssub.s32 %s21, %s28
      %p124 = scmp.eq.s32.totalorder %s123, 0
      %s126 = sadd.s32 %s125, 1
      %s127 = scalar_select %p124, %s125, %s126
      %p130 = pneg %p124
      %p131 = scmp.eq.s32.totalorder %s21, 6
      %p132 = por %p130, %p131
      %p133 = scmp.ne.s32.totalorder %s125, %s128
      %p134 = scmp.eq.s32.totalorder %s21, 0
      %p135 = por %p133, %p134
      %p136 = scmp.ne.s32.totalorder %s125, %s128
      %p137 = scmp.eq.s32.totalorder %s26, 6
      %p138 = por %p136, %p137
      %p139 = scmp.ne.s32.totalorder %s128, %s129
      %p140 = scmp.eq.s32.totalorder %s26, 0
      %p141 = por %p139, %p140
      %p142 = scmp.ne.s32.totalorder %s128, %s129
      %p143 = scmp.eq.s32.totalorder %s27, 6
      %p144 = por %p142, %p143
      %p146 = scmp.ne.s32.totalorder %s129, %s145
      %p147 = scmp.eq.s32.totalorder %s27, 0
      %p148 = por %p146, %p147
      %s149 = ssub.s32 %s21, %s28
      %p150 = scmp.eq.s32.totalorder %s149, 0
      %s152 = sadd.s32 %s151, 1
      %s153 = scalar_select %p150, %s151, %s152
      %p156 = pneg %p150
      %p157 = scmp.eq.s32.totalorder %s21, 6
      %p158 = por %p156, %p157
      %p159 = scmp.ne.s32.totalorder %s151, %s154
      %p160 = scmp.eq.s32.totalorder %s21, 0
      %p161 = por %p159, %p160
      %p162 = scmp.ne.s32.totalorder %s151, %s154
      %p163 = scmp.eq.s32.totalorder %s26, 6
      %p164 = por %p162, %p163
      %p165 = scmp.ne.s32.totalorder %s154, %s155
      %p166 = scmp.eq.s32.totalorder %s26, 0
      %p167 = por %p165, %p166
      %p168 = scmp.ne.s32.totalorder %s154, %s155
      %p169 = scmp.eq.s32.totalorder %s27, 6
      %p170 = por %p168, %p169
      %p172 = scmp.ne.s32.totalorder %s155, %s171
      %p173 = scmp.eq.s32.totalorder %s27, 0
      %p174 = por %p172, %p173
      %p175 = scmp.le.s32.totalorder 1, %s21
      %p176 = scmp.lt.s32.totalorder %s21, 8
      %p177 = pnand %p175, %p176
      %p178 = pneg %p177
      // Predicated region
      $region9: #{tpu_custom_call.1} parent=5 // pred_check
        _
      $region10: #{tpu_custom_call.1} parent=5 // pred_check_branch
        %180 = sbr.rel (%p177) target = $region12
      $region11: #{tpu_custom_call.1} parent=5 // pred_region
        %s181 = ssub.s32 %s21, 1
        // Predicated region
        $region13: #{tpu_custom_call.1} parent=11 // pred_check
          %p182 = pneg %p42
        $region14: #{tpu_custom_call.1} parent=11 // pred_check_branch
          %184 = sbr.rel (%p182) target = $region16
        $region15: #{tpu_custom_call.1} parent=11 // pred_region
          _
        $region16: #{tpu_custom_call.1} parent=11 // pred_fallthru
          _
        // Predicated region
        $region17: #{tpu_custom_call.1} parent=11 // pred_check
          %p185 = pneg %p63
        $region18: #{tpu_custom_call.1} parent=11 // pred_check_branch
          %187 = sbr.rel (%p185) target = $region20
        $region19: #{tpu_custom_call.1} parent=11 // pred_region
          _
        $region20: #{tpu_custom_call.1} parent=11 // pred_fallthru
          _
      $region12: #{tpu_custom_call.1} parent=5 // pred_fallthru
        _
      %p188 = scmp.lt.s32.totalorder %s21, 7
      // Predicated region
      $region21: #{tpu_custom_call.1} parent=5 // pred_check
        %p189 = pneg %p188
      $region22: #{tpu_custom_call.1} parent=5 // pred_check_branch
        %191 = sbr.rel (%p189) target = $region24
      $region23: #{tpu_custom_call.1} parent=5 // pred_region
        // Predicated region
        $region25: #{tpu_custom_call.1} parent=23 // pred_check
          %p192 = pneg %p83
        $region26: #{tpu_custom_call.1} parent=23 // pred_check_branch
          %194 = sbr.rel (%p192) target = $region28
        $region27: #{tpu_custom_call.1} parent=23 // pred_region
          %p195 = scmp.lt.s32.totalorder %s21, 6
          %s196 = scalar_select %p195, %s21, 6
          %s197 = smul.addr %s196, 8
          %s198 = smul.addr %s197, 4
          %s199 = scalar_lea.vmem %s2, %s198
        $region28: #{tpu_custom_call.1} parent=23 // pred_fallthru
          _
        // Predicated region
        $region29: #{tpu_custom_call.1} parent=23 // pred_check
          %p200 = pneg %p109
        $region30: #{tpu_custom_call.1} parent=23 // pred_check_branch
          %202 = sbr.rel (%p200) target = $region32
        $region31: #{tpu_custom_call.1} parent=23 // pred_region
          %s203 = sand.u32 %s99, 1
          %s204 = scalar_lea.sflag [#allocation3], %s203
          %s205 = sand.u32 %s99, 1
          %s206 = smul.addr %s205, 16
          %s207 = scalar_lea.vmem [#allocation2], %s206
          %s209 = ssub.s32 256, 256
          %210 = vsyncadd %s204, %s209
          %s211 = smul.addr %s21, 4
          %s212 = smul.addr %s211, 64
          %s213 = scalar_lea.hbm %s3, %s212
          %s214 = sshll.u32 %s207, 4
          %s215 = int_to_ptr.vmem [resolvable:$true] %s214
          %220 = dma.hbm_to_vmem [thread:$0]  %s213, 256, %s215, %s204, 64, 64, 4
        $region32: #{tpu_custom_call.1} parent=23 // pred_fallthru
          _
      $region24: #{tpu_custom_call.1} parent=5 // pred_fallthru
        _
      %p221 = scmp.le.s32.totalorder 1, %s21
      %p222 = scmp.lt.s32.totalorder %s21, 8
      %p223 = pnand %p221, %p222
      %p224 = pneg %p223
      // Predicated region
      $region33: #{tpu_custom_call.1} parent=5 // pred_check
        _
      $region34: #{tpu_custom_call.1} parent=5 // pred_check_branch
        %226 = sbr.rel (%p223) target = $region36
      $region35: #{tpu_custom_call.1} parent=5 // pred_region
        %s227 = ssub.s32 %s21, 1
        %s228 = sand.u32 %s102, 1
        %s229 = scalar_lea.sflag [#allocation3], %s228
        %s230 = sand.u32 %s102, 1
        %s231 = smul.addr %s230, 16
        %s232 = scalar_lea.vmem [#allocation2], %s231
        // Predicated region
        $region37: #{tpu_custom_call.1} parent=35 // pred_check
          %p233 = pneg %p115
        $region38: #{tpu_custom_call.1} parent=35 // pred_check_branch
          %235 = sbr.rel (%p233) target = $region40
        $region39: #{tpu_custom_call.1} parent=35 // pred_region
          %236 = dma.done %s229, 256
        $region40: #{tpu_custom_call.1} parent=35 // pred_fallthru
          _
        %p237 = pneg %p42
        %p238 = pneg %p39
        %p239 = pneg %p63
        %p240 = pneg %p60
        %p241 = scmp.lt.s32.totalorder %s26, 6
        %s242 = scalar_select %p241, %s26, 6
        %s243 = smul.addr %s242, 8
        %s244 = smul.addr %s243, 4
        %s245 = scalar_lea.vmem %s2, %s244
        %p246 = pneg %p89
        %p247 = pneg %p86
        %s248 = sand.u32 %s102, 1
        %s249 = scalar_lea.sflag [#allocation3], %s248
        %s250 = sand.u32 %s102, 1
        %s251 = smul.addr %s250, 16
        %s252 = scalar_lea.vmem [#allocation2], %s251
        %p253 = pneg %p115
        %p254 = pneg %p112
        %p255 = pneg %p141
        %p256 = pneg %p138
        %s257 = sand.u32 %s128, 1
        %s258 = scalar_lea.sflag [#allocation4], %s257
        %s259 = sand.u32 %s128, 1
        %s260 = smul.addr %s259, 256
        %s261 = scalar_lea.vmem [#allocation5], %s260
        %p262 = pneg %p167
        %p263 = pneg %p164
        %s264 = sand.u32 %s154, 1
        %s265 = scalar_lea.sflag [#allocation7], %s264
        %s266 = sand.u32 %s154, 1
        %s267 = smul.addr %s266, 256
        %s268 = scalar_lea.vmem [#allocation6], %s267
        %p269 = scmp.lt.s32.totalorder %s26, 6
        %s270 = scalar_select %p269, %s26, 6
        %s271 = smul.addr %s270, 8
        %s272 = smul.addr %s271, 4
        %s273 = scalar_lea.vmem %s2, %s272
        %p275 = scmp.eq.s32.totalorder %s26, 0
        %s276 = scalar_select %p275, 1, 0
        %s277 = scvt.s32.f32 %s276
        %p278 = scmp.eq.s32.totalorder %s26, 1
        %s279 = scalar_select %p278, 1, 0
        %s280 = scvt.s32.f32 %s279
        %s281 = smul.f32 %s277, 0.18
        %s282 = smul.f32 %s280, 0.12
        %s283 = sadd.f32 %s281, %s282
        %s284 = ssub.f32 1.0, %s277
        %s285 = ssub.f32 %s284, %s280
        %s286 = smul.f32 %s285, 0.46
        %s287 = sadd.f32 %s283, %s286
        %v288 = vld [vmem:[%s0] sm:$0xf]
        %v289 = vld [vmem:[%s0 + $0x4] sm:$0xf]
        %v290 = vld [vmem:[%s0 + $0x8] sm:$0xf]
        %v291 = vld [vmem:[%s0 + $0xc] sm:$0xf]
        %v292 = vld [vmem:[%s0 + $0x10] sm:$0xf]
        %v293 = vld [vmem:[%s0 + $0x14] sm:$0xf]
        %v294 = vld [vmem:[%s0 + $0x18] sm:$0xf]
        %v295 = vld [vmem:[%s0 + $0x1c] sm:$0xf]
        %v296 = vld [vmem:[%s0 + $0x20] sm:$0xf]
        %v297 = vld [vmem:[%s0 + $0x24] sm:$0xf]
        %v298 = vld [vmem:[%s0 + $0x28] sm:$0xf]
        %v299 = vld [vmem:[%s0 + $0x2c] sm:$0xf]
        %v300 = vld [vmem:[%s0 + $0x30] sm:$0xf]
        %v301 = vld [vmem:[%s0 + $0x34] sm:$0xf]
        %v302 = vld [vmem:[%s0 + $0x38] sm:$0xf]
        %v303 = vld [vmem:[%s0 + $0x3c] sm:$0xf]
        %v304 = vld [vmem:[%s0 + $0x40] sm:$0xf]
        %v305 = vld [vmem:[%s0 + $0x44] sm:$0xf]
        %v306 = vld [vmem:[%s0 + $0x48] sm:$0xf]
        %v307 = vld [vmem:[%s0 + $0x4c] sm:$0xf]
        %v308 = vld [vmem:[%s0 + $0x50] sm:$0xf]
        %v309 = vld [vmem:[%s0 + $0x54] sm:$0xf]
        %v310 = vld [vmem:[%s0 + $0x58] sm:$0xf]
        %v311 = vld [vmem:[%s0 + $0x5c] sm:$0xf]
        %v312 = vld [vmem:[%s0 + $0x60] sm:$0xf]
        %v313 = vld [vmem:[%s0 + $0x64] sm:$0xf]
        %v314 = vld [vmem:[%s0 + $0x68] sm:$0xf]
        %v315 = vld [vmem:[%s0 + $0x6c] sm:$0xf]
        %v316 = vld [vmem:[%s0 + $0x70] sm:$0xf]
        %v317 = vld [vmem:[%s0 + $0x74] sm:$0xf]
        %v318 = vld [vmem:[%s0 + $0x78] sm:$0xf]
        %v319 = vld [vmem:[%s0 + $0x7c] sm:$0xf]
        %v320 = vld [vmem:[%s1] sm:$0xf]
        %v321 = vld [vmem:[%s1 + $0x4] sm:$0xf]
        %v322 = vld [vmem:[%s1 + $0x8] sm:$0xf]
        %v323 = vld [vmem:[%s1 + $0xc] sm:$0xf]
        %v324 = vld [vmem:[%s1 + $0x10] sm:$0xf]
        %v325 = vld [vmem:[%s1 + $0x14] sm:$0xf]
        %v326 = vld [vmem:[%s1 + $0x18] sm:$0xf]
        %v327 = vld [vmem:[%s1 + $0x1c] sm:$0xf]
        %v328 = vld [vmem:[%s1 + $0x20] sm:$0xf]
        %v329 = vld [vmem:[%s1 + $0x24] sm:$0xf]
        %v330 = vld [vmem:[%s1 + $0x28] sm:$0xf]
        %v331 = vld [vmem:[%s1 + $0x2c] sm:$0xf]
        %v332 = vld [vmem:[%s1 + $0x30] sm:$0xf]
        %v333 = vld [vmem:[%s1 + $0x34] sm:$0xf]
        %v334 = vld [vmem:[%s1 + $0x38] sm:$0xf]
        %v335 = vld [vmem:[%s1 + $0x3c] sm:$0xf]
        %v336 = vld [vmem:[%s1 + $0x40] sm:$0xf]
        %v337 = vld [vmem:[%s1 + $0x44] sm:$0xf]
        %v338 = vld [vmem:[%s1 + $0x48] sm:$0xf]
        %v339 = vld [vmem:[%s1 + $0x4c] sm:$0xf]
        %v340 = vld [vmem:[%s1 + $0x50] sm:$0xf]
        %v341 = vld [vmem:[%s1 + $0x54] sm:$0xf]
        %v342 = vld [vmem:[%s1 + $0x58] sm:$0xf]
        %v343 = vld [vmem:[%s1 + $0x5c] sm:$0xf]
        %v344 = vld [vmem:[%s1 + $0x60] sm:$0xf]
        %v345 = vld [vmem:[%s1 + $0x64] sm:$0xf]
        %v346 = vld [vmem:[%s1 + $0x68] sm:$0xf]
        %v347 = vld [vmem:[%s1 + $0x6c] sm:$0xf]
        %v348 = vld [vmem:[%s1 + $0x70] sm:$0xf]
        %v349 = vld [vmem:[%s1 + $0x74] sm:$0xf]
        %v350 = vld [vmem:[%s1 + $0x78] sm:$0xf]
        %v351 = vld [vmem:[%s1 + $0x7c] sm:$0xf]
        %v352 = vld [vmem:[%s273] sm:$0xf]
        %v353 = vld [vmem:[%s273 + $0x4] sm:$0xf]
        %v354 = vld [vmem:[%s273 + $0x8] sm:$0xf]
        %v355 = vld [vmem:[%s273 + $0xc] sm:$0xf]
        %v356 = vld [vmem:[%s273 + $0x10] sm:$0xf]
        %v357 = vld [vmem:[%s273 + $0x14] sm:$0xf]
        %v358 = vld [vmem:[%s273 + $0x18] sm:$0xf]
        %v359 = vld [vmem:[%s273 + $0x1c] sm:$0xf]
        %v360 = vld [vmem:[%s232] sm:$0xf]
        %v361 = vld [vmem:[%s232 + $0x4] sm:$0xf]
        %v362 = vld [vmem:[%s232 + $0x8] sm:$0xf]
        %v363 = vld [vmem:[%s232 + $0xc] sm:$0xf]
        %v380 = vunpack.c.l.b16 %v288
        %v381 = vunpack.c.l.b16 %v289
        %v382 = vunpack.c.l.b16 %v290
        %v383 = vunpack.c.l.b16 %v291
        %v384 = vunpack.c.l.b16 %v292
        %v385 = vunpack.c.l.b16 %v293
        %v386 = vunpack.c.l.b16 %v294
        %v387 = vunpack.c.l.b16 %v295
        %v388 = vunpack.c.l.b16 %v296
        %v389 = vunpack.c.l.b16 %v297
        %v390 = vunpack.c.l.b16 %v298
        %v391 = vunpack.c.l.b16 %v299
        %v392 = vunpack.c.l.b16 %v300
        %v393 = vunpack.c.l.b16 %v301
        %v394 = vunpack.c.l.b16 %v302
        %v395 = vunpack.c.l.b16 %v303
        %v396 = vpack.c.b16 %v381, %v380
        %v397 = vpack.c.b16 %v383, %v382
        %v398 = vpack.c.b16 %v385, %v384
        %v399 = vpack.c.b16 %v387, %v386
        %v400 = vpack.c.b16 %v389, %v388
        %v401 = vpack.c.b16 %v391, %v390
        %v402 = vpack.c.b16 %v393, %v392
        %v403 = vpack.c.b16 %v395, %v394
        %v408 = vunpack.c.l.b16 %v352
        %v409 = vunpack.c.l.b16 %v353
        %v410 = vunpack.c.l.b16 %v354
        %v411 = vunpack.c.l.b16 %v355
        %v412 = vpack.c.b16 %v409, %v408
        %v413 = vpack.c.b16 %v411, %v410
        %vm416 = vcmask 261120
        %v418 = vsel %vm416, %v396, 0
        %v421 = vsel %vm416, %v397, 0
        %v424 = vsel %vm416, %v398, 0
        %v427 = vsel %vm416, %v399, 0
        %v430 = vsel %vm416, %v400, 0
        %v433 = vsel %vm416, %v401, 0
        %v436 = vsel %vm416, %v402, 0
        %v439 = vsel %vm416, %v403, 0
        %441 = vmatprep.subr.bf16.mxu0 0
        %442 = vmatpush1.bf16.msra.mxu0 %v412
        %443 = vmatprep.subr.bf16.mxu0 0
        %444 = vmatpush1.bf16.msra.mxu0 %v413
        %445 = vmatprep.subr.bf16.mxu0 0
        %446 = vmatpush1.bf16.msra.mxu0 0
        %447 = vmatprep.subr.bf16.mxu0 0
        %448 = vmatpush1.bf16.msra.mxu0 0
        %449 = vmatprep.subr.bf16.mxu0 0
        %450 = vmatpush1.bf16.msra.mxu0 0
        %451 = vmatprep.subr.bf16.mxu0 0
        %452 = vmatpush1.bf16.msra.mxu0 0
        %453 = vmatprep.subr.bf16.mxu0 0
        %454 = vmatpush1.bf16.msra.mxu0 0
        %455 = vmatprep.subr.bf16.mxu0 0
        %456 = vmatpush1.bf16.msra.mxu0 0
        %457 = vmatprep.subr.bf16.mxu0 0
        %458 = vmatpush1.bf16.msra.mxu0 0
        %459 = vmatprep.subr.bf16.mxu0 0
        %460 = vmatpush1.bf16.msra.mxu0 0
        %461 = vmatprep.subr.bf16.mxu0 0
        %462 = vmatpush1.bf16.msra.mxu0 0
        %463 = vmatprep.subr.bf16.mxu0 0
        %464 = vmatpush1.bf16.msra.mxu0 0
        %465 = vmatprep.subr.bf16.mxu0 0
        %466 = vmatpush1.bf16.msra.mxu0 0
        %467 = vmatprep.subr.bf16.mxu0 0
        %468 = vmatpush1.bf16.msra.mxu0 0
        %469 = vmatprep.subr.bf16.mxu0 0
        %470 = vmatpush1.bf16.msra.mxu0 0
        %471 = vmatprep.subr.bf16.mxu0 0
        %472 = vmatpush1.bf16.msra.mxu0 0
        %473 = vmatprep.mubr.bf16.mxu0 0
        %474 = vmatmul.mubr.bf16.gmra.mrb[0].mxu0 %v418
        %v475 = vpop.f32.mrb[0].mxu0
        %v476 = vadd.f32 0.0, %v475
        %v477 = vpop.f32.mrb[0].mxu0
        %v478 = vpop.f32.mrb[0].mxu0
        %v479 = vadd.f32 0.0, %v478
        %v480 = vpop.f32.mrb[0].mxu0
        %481 = vmatprep.mubr.bf16.mxu0 0
        %482 = vmatmul.mubr.bf16.gmra.mrb[0].mxu0 %v421
        %v483 = vpop.f32.mrb[0].mxu0
        %v484 = vadd.f32 0.0, %v483
        %v485 = vpop.f32.mrb[0].mxu0
        %v486 = vpop.f32.mrb[0].mxu0
        %v487 = vadd.f32 0.0, %v486
        %v488 = vpop.f32.mrb[0].mxu0
        %489 = vmatprep.mubr.bf16.mxu0 0
        %490 = vmatmul.mubr.bf16.gmra.mrb[0].mxu0 %v424
        %v491 = vpop.f32.mrb[0].mxu0
        %v492 = vadd.f32 0.0, %v491
        %v493 = vpop.f32.mrb[0].mxu0
        %v494 = vpop.f32.mrb[0].mxu0
        %v495 = vadd.f32 0.0, %v494
        %v496 = vpop.f32.mrb[0].mxu0
        %497 = vmatprep.mubr.bf16.mxu0 0
        %498 = vmatmul.mubr.bf16.gmra.mrb[0].mxu0 %v427
        %v499 = vpop.f32.mrb[0].mxu0
        %v500 = vadd.f32 0.0, %v499
        %v501 = vpop.f32.mrb[0].mxu0
        %v502 = vpop.f32.mrb[0].mxu0
        %v503 = vadd.f32 0.0, %v502
        %v504 = vpop.f32.mrb[0].mxu0
        %505 = vmatprep.mubr.bf16.mxu0 0
        %506 = vmatmul.mubr.bf16.gmra.mrb[0].mxu0 %v430
        %v507 = vpop.f32.mrb[0].mxu0
        %v508 = vadd.f32 0.0, %v507
        %v509 = vpop.f32.mrb[0].mxu0
        %v510 = vpop.f32.mrb[0].mxu0
        %v511 = vadd.f32 0.0, %v510
        %v512 = vpop.f32.mrb[0].mxu0
        %513 = vmatprep.mubr.bf16.mxu0 0
        %514 = vmatmul.mubr.bf16.gmra.mrb[0].mxu0 %v433
        %v515 = vpop.f32.mrb[0].mxu0
        %v516 = vadd.f32 0.0, %v515
        %v517 = vpop.f32.mrb[0].mxu0
        %v518 = vpop.f32.mrb[0].mxu0
        %v519 = vadd.f32 0.0, %v518
        %v520 = vpop.f32.mrb[0].mxu0
        %521 = vmatprep.mubr.bf16.mxu0 0
        %522 = vmatmul.mubr.bf16.gmra.mrb[0].mxu0 %v436
        %v523 = vpop.f32.mrb[0].mxu0
        %v524 = vadd.f32 0.0, %v523
        %v525 = vpop.f32.mrb[0].mxu0
        %v526 = vpop.f32.mrb[0].mxu0
        %v527 = vadd.f32 0.0, %v526
        %v528 = vpop.f32.mrb[0].mxu0
        %529 = vmatprep.mubr.bf16.mxu0 0
        %530 = vmatmul.mubr.bf16.gmra.mrb[0].mxu0 %v439
        %v531 = vpop.f32.mrb[0].mxu0
        %v532 = vadd.f32 0.0, %v531
        %v533 = vpop.f32.mrb[0].mxu0
        %v534 = vpop.f32.mrb[0].mxu0
        %v535 = vadd.f32 0.0, %v534
        %v536 = vpop.f32.mrb[0].mxu0
        %537 = vdwg.mxu0
        %v554 = vunpack.c.l.b16 %v304
        %v555 = vunpack.c.l.b16 %v305
        %v556 = vunpack.c.l.b16 %v306
        %v557 = vunpack.c.l.b16 %v307
        %v558 = vunpack.c.l.b16 %v308
        %v559 = vunpack.c.l.b16 %v309
        %v560 = vunpack.c.l.b16 %v310
        %v561 = vunpack.c.l.b16 %v311
        %v562 = vunpack.c.l.b16 %v312
        %v563 = vunpack.c.l.b16 %v313
        %v564 = vunpack.c.l.b16 %v314
        %v565 = vunpack.c.l.b16 %v315
        %v566 = vunpack.c.l.b16 %v316
        %v567 = vunpack.c.l.b16 %v317
        %v568 = vunpack.c.l.b16 %v318
        %v569 = vunpack.c.l.b16 %v319
        %v570 = vpack.c.b16 %v555, %v554
        %v571 = vpack.c.b16 %v557, %v556
        %v572 = vpack.c.b16 %v559, %v558
        %v573 = vpack.c.b16 %v561, %v560
        %v574 = vpack.c.b16 %v563, %v562
        %v575 = vpack.c.b16 %v565, %v564
        %v576 = vpack.c.b16 %v567, %v566
        %v577 = vpack.c.b16 %v569, %v568
        %v582 = vunpack.c.l.b16 %v356
        %v583 = vunpack.c.l.b16 %v357
        %v584 = vunpack.c.l.b16 %v358
        %v585 = vunpack.c.l.b16 %v359
        %v586 = vpack.c.b16 %v583, %v582
        %v587 = vpack.c.b16 %v585, %v584
        %v591 = vsel %vm416, %v570, 0
        %v594 = vsel %vm416, %v571, 0
        %v597 = vsel %vm416, %v572, 0
        %v600 = vsel %vm416, %v573, 0
        %v603 = vsel %vm416, %v574, 0
        %v606 = vsel %vm416, %v575, 0
        %v609 = vsel %vm416, %v576, 0
        %v612 = vsel %vm416, %v577, 0
        %614 = vmatprep.subr.bf16.mxu0 0
        %615 = vmatpush1.bf16.msra.mxu0 %v586
        %616 = vmatprep.subr.bf16.mxu0 0
        %617 = vmatpush1.bf16.msra.mxu0 %v587
        %618 = vmatprep.subr.bf16.mxu0 0
        %619 = vmatpush1.bf16.msra.mxu0 0
        %620 = vmatprep.subr.bf16.mxu0 0
        %621 = vmatpush1.bf16.msra.mxu0 0
        %622 = vmatprep.subr.bf16.mxu0 0
        %623 = vmatpush1.bf16.msra.mxu0 0
        %624 = vmatprep.subr.bf16.mxu0 0
        %625 = vmatpush1.bf16.msra.mxu0 0
        %626 = vmatprep.subr.bf16.mxu0 0
        %627 = vmatpush1.bf16.msra.mxu0 0
        %628 = vmatprep.subr.bf16.mxu0 0
        %629 = vmatpush1.bf16.msra.mxu0 0
        %630 = vmatprep.subr.bf16.mxu0 0
        %631 = vmatpush1.bf16.msra.mxu0 0
        %632 = vmatprep.subr.bf16.mxu0 0
        %633 = vmatpush1.bf16.msra.mxu0 0
        %634 = vmatprep.subr.bf16.mxu0 0
        %635 = vmatpush1.bf16.msra.mxu0 0
        %636 = vmatprep.subr.bf16.mxu0 0
        %637 = vmatpush1.bf16.msra.mxu0 0
        %638 = vmatprep.subr.bf16.mxu0 0
        %639 = vmatpush1.bf16.msra.mxu0 0
        %640 = vmatprep.subr.bf16.mxu0 0
        %641 = vmatpush1.bf16.msra.mxu0 0
        %642 = vmatprep.subr.bf16.mxu0 0
        %643 = vmatpush1.bf16.msra.mxu0 0
        %644 = vmatprep.subr.bf16.mxu0 0
        %645 = vmatpush1.bf16.msra.mxu0 0
        %646 = vmatprep.mubr.bf16.mxu0 0
        %647 = vmatmul.mubr.bf16.gmra.mrb[0].mxu0 %v591
        %v648 = vpop.f32.mrb[0].mxu0
        %v649 = vadd.f32 0.0, %v648
        %v650 = vpop.f32.mrb[0].mxu0
        %v651 = vpop.f32.mrb[0].mxu0
        %v652 = vadd.f32 0.0, %v651
        %v653 = vpop.f32.mrb[0].mxu0
        %654 = vmatprep.mubr.bf16.mxu0 0
        %655 = vmatmul.mubr.bf16.gmra.mrb[0].mxu0 %v594
        %v656 = vpop.f32.mrb[0].mxu0
        %v657 = vadd.f32 0.0, %v656
        %v658 = vpop.f32.mrb[0].mxu0
        %v659 = vpop.f32.mrb[0].mxu0
        %v660 = vadd.f32 0.0, %v659
        %v661 = vpop.f32.mrb[0].mxu0
        %662 = vmatprep.mubr.bf16.mxu0 0
        %663 = vmatmul.mubr.bf16.gmra.mrb[0].mxu0 %v597
        %v664 = vpop.f32.mrb[0].mxu0
        %v665 = vadd.f32 0.0, %v664
        %v666 = vpop.f32.mrb[0].mxu0
        %v667 = vpop.f32.mrb[0].mxu0
        %v668 = vadd.f32 0.0, %v667
        %v669 = vpop.f32.mrb[0].mxu0
        %670 = vmatprep.mubr.bf16.mxu0 0
        %671 = vmatmul.mubr.bf16.gmra.mrb[0].mxu0 %v600
        %v672 = vpop.f32.mrb[0].mxu0
        %v673 = vadd.f32 0.0, %v672
        %v674 = vpop.f32.mrb[0].mxu0
        %v675 = vpop.f32.mrb[0].mxu0
        %v676 = vadd.f32 0.0, %v675
        %v677 = vpop.f32.mrb[0].mxu0
        %678 = vmatprep.mubr.bf16.mxu0 0
        %679 = vmatmul.mubr.bf16.gmra.mrb[0].mxu0 %v603
        %v680 = vpop.f32.mrb[0].mxu0
        %v681 = vadd.f32 0.0, %v680
        %v682 = vpop.f32.mrb[0].mxu0
        %v683 = vpop.f32.mrb[0].mxu0
        %v684 = vadd.f32 0.0, %v683
        %v685 = vpop.f32.mrb[0].mxu0
        %686 = vmatprep.mubr.bf16.mxu0 0
        %687 = vmatmul.mubr.bf16.gmra.mrb[0].mxu0 %v606
        %v688 = vpop.f32.mrb[0].mxu0
        %v689 = vadd.f32 0.0, %v688
        %v690 = vpop.f32.mrb[0].mxu0
        %v691 = vpop.f32.mrb[0].mxu0
        %v692 = vadd.f32 0.0, %v691
        %v693 = vpop.f32.mrb[0].mxu0
        %694 = vmatprep.mubr.bf16.mxu0 0
        %695 = vmatmul.mubr.bf16.gmra.mrb[0].mxu0 %v609
        %v696 = vpop.f32.mrb[0].mxu0
        %v697 = vadd.f32 0.0, %v696
        %v698 = vpop.f32.mrb[0].mxu0
        %v699 = vpop.f32.mrb[0].mxu0
        %v700 = vadd.f32 0.0, %v699
        %v701 = vpop.f32.mrb[0].mxu0
        %702 = vmatprep.mubr.bf16.mxu0 0
        %703 = vmatmul.mubr.bf16.gmra.mrb[0].mxu0 %v612
        %v704 = vpop.f32.mrb[0].mxu0
        %v705 = vadd.f32 0.0, %v704
        %v706 = vpop.f32.mrb[0].mxu0
        %v707 = vpop.f32.mrb[0].mxu0
        %v708 = vadd.f32 0.0, %v707
        %v709 = vpop.f32.mrb[0].mxu0
        %710 = vdwg.mxu0
        %v727 = vunpack.c.l.b16 %v320
        %v728 = vunpack.c.l.b16 %v321
        %v729 = vunpack.c.l.b16 %v322
        %v730 = vunpack.c.l.b16 %v323
        %v731 = vunpack.c.l.b16 %v324
        %v732 = vunpack.c.l.b16 %v325
        %v733 = vunpack.c.l.b16 %v326
        %v734 = vunpack.c.l.b16 %v327
        %v735 = vunpack.c.l.b16 %v328
        %v736 = vunpack.c.l.b16 %v329
        %v737 = vunpack.c.l.b16 %v330
        %v738 = vunpack.c.l.b16 %v331
        %v739 = vunpack.c.l.b16 %v332
        %v740 = vunpack.c.l.b16 %v333
        %v741 = vunpack.c.l.b16 %v334
        %v742 = vunpack.c.l.b16 %v335
        %v743 = vpack.c.b16 %v728, %v727
        %v744 = vpack.c.b16 %v730, %v729
        %v745 = vpack.c.b16 %v732, %v731
        %v746 = vpack.c.b16 %v734, %v733
        %v747 = vpack.c.b16 %v736, %v735
        %v748 = vpack.c.b16 %v738, %v737
        %v749 = vpack.c.b16 %v740, %v739
        %v750 = vpack.c.b16 %v742, %v741
        %v753 = vunpack.c.l.b16 %v360
        %v754 = vunpack.c.l.b16 %v361
        %v755 = vpack.c.b16 %v754, %v753
        %vm757 = vcmask 130048
        %v759 = vsel %vm757, %v743, 0
        %v762 = vsel %vm757, %v744, 0
        %v765 = vsel %vm757, %v745, 0
        %v768 = vsel %vm757, %v746, 0
        %v771 = vsel %vm757, %v747, 0
        %v774 = vsel %vm757, %v748, 0
        %v777 = vsel %vm757, %v749, 0
        %v780 = vsel %vm757, %v750, 0
        %782 = vmatprep.subr.bf16.mxu0 0
        %783 = vmatpush1.bf16.msra.mxu0 %v755
        %784 = vmatprep.subr.bf16.mxu0 0
        %785 = vmatpush1.bf16.msra.mxu0 0
        %786 = vmatprep.subr.bf16.mxu0 0
        %787 = vmatpush1.bf16.msra.mxu0 0
        %788 = vmatprep.subr.bf16.mxu0 0
        %789 = vmatpush1.bf16.msra.mxu0 0
        %790 = vmatprep.subr.bf16.mxu0 0
        %791 = vmatpush1.bf16.msra.mxu0 0
        %792 = vmatprep.subr.bf16.mxu0 0
        %793 = vmatpush1.bf16.msra.mxu0 0
        %794 = vmatprep.subr.bf16.mxu0 0
        %795 = vmatpush1.bf16.msra.mxu0 0
        %796 = vmatprep.subr.bf16.mxu0 0
        %797 = vmatpush1.bf16.msra.mxu0 0
        %798 = vmatprep.subr.bf16.mxu0 0
        %799 = vmatpush1.bf16.msra.mxu0 0
        %800 = vmatprep.subr.bf16.mxu0 0
        %801 = vmatpush1.bf16.msra.mxu0 0
        %802 = vmatprep.subr.bf16.mxu0 0
        %803 = vmatpush1.bf16.msra.mxu0 0
        %804 = vmatprep.subr.bf16.mxu0 0
        %805 = vmatpush1.bf16.msra.mxu0 0
        %806 = vmatprep.subr.bf16.mxu0 0
        %807 = vmatpush1.bf16.msra.mxu0 0
        %808 = vmatprep.subr.bf16.mxu0 0
        %809 = vmatpush1.bf16.msra.mxu0 0
        %810 = vmatprep.subr.bf16.mxu0 0
        %811 = vmatpush1.bf16.msra.mxu0 0
        %812 = vmatprep.subr.bf16.mxu0 0
        %813 = vmatpush1.bf16.msra.mxu0 0
        %814 = vmatprep.mubr.bf16.mxu0 0
        %815 = vmatmul.mubr.bf16.gmra.mrb[0].mxu0 %v759
        %v816 = vpop.f32.mrb[0].mxu0
        %v817 = vadd.f32 0.0, %v816
        %v818 = vpop.f32.mrb[0].mxu0
        %v819 = vpop.f32.mrb[0].mxu0
        %v820 = vadd.f32 0.0, %v819
        %v821 = vpop.f32.mrb[0].mxu0
        %822 = vmatprep.mubr.bf16.mxu0 0
        %823 = vmatmul.mubr.bf16.gmra.mrb[0].mxu0 %v762
        %v824 = vpop.f32.mrb[0].mxu0
        %v825 = vadd.f32 0.0, %v824
        %v826 = vpop.f32.mrb[0].mxu0
        %v827 = vpop.f32.mrb[0].mxu0
        %v828 = vadd.f32 0.0, %v827
        %v829 = vpop.f32.mrb[0].mxu0
        %830 = vmatprep.mubr.bf16.mxu0 0
        %831 = vmatmul.mubr.bf16.gmra.mrb[0].mxu0 %v765
        %v832 = vpop.f32.mrb[0].mxu0
        %v833 = vadd.f32 0.0, %v832
        %v834 = vpop.f32.mrb[0].mxu0
        %v835 = vpop.f32.mrb[0].mxu0
        %v836 = vadd.f32 0.0, %v835
        %v837 = vpop.f32.mrb[0].mxu0
        %838 = vmatprep.mubr.bf16.mxu0 0
        %839 = vmatmul.mubr.bf16.gmra.mrb[0].mxu0 %v768
        %v840 = vpop.f32.mrb[0].mxu0
        %v841 = vadd.f32 0.0, %v840
        %v842 = vpop.f32.mrb[0].mxu0
        %v843 = vpop.f32.mrb[0].mxu0
        %v844 = vadd.f32 0.0, %v843
        %v845 = vpop.f32.mrb[0].mxu0
        %846 = vmatprep.mubr.bf16.mxu0 0
        %847 = vmatmul.mubr.bf16.gmra.mrb[0].mxu0 %v771
        %v848 = vpop.f32.mrb[0].mxu0
        %v849 = vadd.f32 0.0, %v848
        %v850 = vpop.f32.mrb[0].mxu0
        %v851 = vpop.f32.mrb[0].mxu0
        %v852 = vadd.f32 0.0, %v851
        %v853 = vpop.f32.mrb[0].mxu0
        %854 = vmatprep.mubr.bf16.mxu0 0
        %855 = vmatmul.mubr.bf16.gmra.mrb[0].mxu0 %v774
        %v856 = vpop.f32.mrb[0].mxu0
        %v857 = vadd.f32 0.0, %v856
        %v858 = vpop.f32.mrb[0].mxu0
        %v859 = vpop.f32.mrb[0].mxu0
        %v860 = vadd.f32 0.0, %v859
        %v861 = vpop.f32.mrb[0].mxu0
        %862 = vmatprep.mubr.bf16.mxu0 0
        %863 = vmatmul.mubr.bf16.gmra.mrb[0].mxu0 %v777
        %v864 = vpop.f32.mrb[0].mxu0
        %v865 = vadd.f32 0.0, %v864
        %v866 = vpop.f32.mrb[0].mxu0
        %v867 = vpop.f32.mrb[0].mxu0
        %v868 = vadd.f32 0.0, %v867
        %v869 = vpop.f32.mrb[0].mxu0
        %870 = vmatprep.mubr.bf16.mxu0 0
        %871 = vmatmul.mubr.bf16.gmra.mrb[0].mxu0 %v780
        %v872 = vpop.f32.mrb[0].mxu0
        %v873 = vadd.f32 0.0, %v872
        %v874 = vpop.f32.mrb[0].mxu0
        %v875 = vpop.f32.mrb[0].mxu0
        %v876 = vadd.f32 0.0, %v875
        %v877 = vpop.f32.mrb[0].mxu0
        %878 = vdwg.mxu0
        %v895 = vunpack.c.l.b16 %v336
        %v896 = vunpack.c.l.b16 %v337
        %v897 = vunpack.c.l.b16 %v338
        %v898 = vunpack.c.l.b16 %v339
        %v899 = vunpack.c.l.b16 %v340
        %v900 = vunpack.c.l.b16 %v341
        %v901 = vunpack.c.l.b16 %v342
        %v902 = vunpack.c.l.b16 %v343
        %v903 = vunpack.c.l.b16 %v344
        %v904 = vunpack.c.l.b16 %v345
        %v905 = vunpack.c.l.b16 %v346
        %v906 = vunpack.c.l.b16 %v347
        %v907 = vunpack.c.l.b16 %v348
        %v908 = vunpack.c.l.b16 %v349
        %v909 = vunpack.c.l.b16 %v350
        %v910 = vunpack.c.l.b16 %v351
        %v911 = vpack.c.b16 %v896, %v895
        %v912 = vpack.c.b16 %v898, %v897
        %v913 = vpack.c.b16 %v900, %v899
        %v914 = vpack.c.b16 %v902, %v901
        %v915 = vpack.c.b16 %v904, %v903
        %v916 = vpack.c.b16 %v906, %v905
        %v917 = vpack.c.b16 %v908, %v907
        %v918 = vpack.c.b16 %v910, %v909
        %v921 = vunpack.c.l.b16 %v362
        %v922 = vunpack.c.l.b16 %v363
        %v923 = vpack.c.b16 %v922, %v921
        %v926 = vsel %vm757, %v911, 0
        %v929 = vsel %vm757, %v912, 0
        %v932 = vsel %vm757, %v913, 0
        %v935 = vsel %vm757, %v914, 0
        %v938 = vsel %vm757, %v915, 0
        %v941 = vsel %vm757, %v916, 0
        %v944 = vsel %vm757, %v917, 0
        %v947 = vsel %vm757, %v918, 0
        %949 = vmatprep.subr.bf16.mxu0 0
        %950 = vmatpush1.bf16.msra.mxu0 %v923
        %951 = vmatprep.subr.bf16.mxu0 0
        %952 = vmatpush1.bf16.msra.mxu0 0
        %953 = vmatprep.subr.bf16.mxu0 0
        %954 = vmatpush1.bf16.msra.mxu0 0
        %955 = vmatprep.subr.bf16.mxu0 0
        %956 = vmatpush1.bf16.msra.mxu0 0
        %957 = vmatprep.subr.bf16.mxu0 0
        %958 = vmatpush1.bf16.msra.mxu0 0
        %959 = vmatprep.subr.bf16.mxu0 0
        %960 = vmatpush1.bf16.msra.mxu0 0
        %961 = vmatprep.subr.bf16.mxu0 0
        %962 = vmatpush1.bf16.msra.mxu0 0
        %963 = vmatprep.subr.bf16.mxu0 0
        %964 = vmatpush1.bf16.msra.mxu0 0
        %965 = vmatprep.subr.bf16.mxu0 0
        %966 = vmatpush1.bf16.msra.mxu0 0
        %967 = vmatprep.subr.bf16.mxu0 0
        %968 = vmatpush1.bf16.msra.mxu0 0
        %969 = vmatprep.subr.bf16.mxu0 0
        %970 = vmatpush1.bf16.msra.mxu0 0
        %971 = vmatprep.subr.bf16.mxu0 0
        %972 = vmatpush1.bf16.msra.mxu0 0
        %973 = vmatprep.subr.bf16.mxu0 0
        %974 = vmatpush1.bf16.msra.mxu0 0
        %975 = vmatprep.subr.bf16.mxu0 0
        %976 = vmatpush1.bf16.msra.mxu0 0
        %977 = vmatprep.subr.bf16.mxu0 0
        %978 = vmatpush1.bf16.msra.mxu0 0
        %979 = vmatprep.subr.bf16.mxu0 0
        %980 = vmatpush1.bf16.msra.mxu0 0
        %981 = vmatprep.mubr.bf16.mxu0 0
        %982 = vmatmul.mubr.bf16.gmra.mrb[0].mxu0 %v926
        %v983 = vpop.f32.mrb[0].mxu0
        %v984 = vadd.f32 0.0, %v983
        %v985 = vpop.f32.mrb[0].mxu0
        %v986 = vpop.f32.mrb[0].mxu0
        %v987 = vadd.f32 0.0, %v986
        %v988 = vpop.f32.mrb[0].mxu0
        %989 = vmatprep.mubr.bf16.mxu0 0
        %990 = vmatmul.mubr.bf16.gmra.mrb[0].mxu0 %v929
        %v991 = vpop.f32.mrb[0].mxu0
        %v992 = vadd.f32 0.0, %v991
        %v993 = vpop.f32.mrb[0].mxu0
        %v994 = vpop.f32.mrb[0].mxu0
        %v995 = vadd.f32 0.0, %v994
        %v996 = vpop.f32.mrb[0].mxu0
        %997 = vmatprep.mubr.bf16.mxu0 0
        %998 = vmatmul.mubr.bf16.gmra.mrb[0].mxu0 %v932
        %v999 = vpop.f32.mrb[0].mxu0
        %v1000 = vadd.f32 0.0, %v999
        %v1001 = vpop.f32.mrb[0].mxu0
        %v1002 = vpop.f32.mrb[0].mxu0
        %v1003 = vadd.f32 0.0, %v1002
        %v1004 = vpop.f32.mrb[0].mxu0
        %1005 = vmatprep.mubr.bf16.mxu0 0
        %1006 = vmatmul.mubr.bf16.gmra.mrb[0].mxu0 %v935
        %v1007 = vpop.f32.mrb[0].mxu0
        %v1008 = vadd.f32 0.0, %v1007
        %v1009 = vpop.f32.mrb[0].mxu0
        %v1010 = vpop.f32.mrb[0].mxu0
        %v1011 = vadd.f32 0.0, %v1010
        %v1012 = vpop.f32.mrb[0].mxu0
        %1013 = vmatprep.mubr.bf16.mxu0 0
        %1014 = vmatmul.mubr.bf16.gmra.mrb[0].mxu0 %v938
        %v1015 = vpop.f32.mrb[0].mxu0
        %v1016 = vadd.f32 0.0, %v1015
        %v1017 = vpop.f32.mrb[0].mxu0
        %v1018 = vpop.f32.mrb[0].mxu0
        %v1019 = vadd.f32 0.0, %v1018
        %v1020 = vpop.f32.mrb[0].mxu0
        %1021 = vmatprep.mubr.bf16.mxu0 0
        %1022 = vmatmul.mubr.bf16.gmra.mrb[0].mxu0 %v941
        %v1023 = vpop.f32.mrb[0].mxu0
        %v1024 = vadd.f32 0.0, %v1023
        %v1025 = vpop.f32.mrb[0].mxu0
        %v1026 = vpop.f32.mrb[0].mxu0
        %v1027 = vadd.f32 0.0, %v1026
        %v1028 = vpop.f32.mrb[0].mxu0
        %1029 = vmatprep.mubr.bf16.mxu0 0
        %1030 = vmatmul.mubr.bf16.gmra.mrb[0].mxu0 %v944
        %v1031 = vpop.f32.mrb[0].mxu0
        %v1032 = vadd.f32 0.0, %v1031
        %v1033 = vpop.f32.mrb[0].mxu0
        %v1034 = vpop.f32.mrb[0].mxu0
        %v1035 = vadd.f32 0.0, %v1034
        %v1036 = vpop.f32.mrb[0].mxu0
        %1037 = vmatprep.mubr.bf16.mxu0 0
        %1038 = vmatmul.mubr.bf16.gmra.mrb[0].mxu0 %v947
        %v1039 = vpop.f32.mrb[0].mxu0
        %v1040 = vadd.f32 0.0, %v1039
        %v1041 = vpop.f32.mrb[0].mxu0
        %v1042 = vpop.f32.mrb[0].mxu0
        %v1043 = vadd.f32 0.0, %v1042
        %v1044 = vpop.f32.mrb[0].mxu0
        %1045 = vdwg.mxu0
        %v1046 = vadd.f32 %v476, %v479
        %v1047 = vadd.f32 %v1046, %v484
        %v1048 = vadd.f32 %v1047, %v487
        %v1049 = vadd.f32 %v1048, %v492
        %v1050 = vadd.f32 %v1049, %v495
        %v1051 = vadd.f32 %v1050, %v500
        %v1052 = vadd.f32 %v1051, %v503
        %v1053 = vadd.f32 %v1052, %v508
        %v1054 = vadd.f32 %v1053, %v511
        %v1055 = vadd.f32 %v1054, %v516
        %v1056 = vadd.f32 %v1055, %v519
        %v1057 = vadd.f32 %v1056, %v524
        %v1058 = vadd.f32 %v1057, %v527
        %v1059 = vadd.f32 %v1058, %v532
        %v1060 = vadd.f32 %v1059, %v535
        %v1061 = vadd.f32 %v1060, %v649
        %v1062 = vadd.f32 %v1061, %v652
        %v1063 = vadd.f32 %v1062, %v657
        %v1064 = vadd.f32 %v1063, %v660
        %v1065 = vadd.f32 %v1064, %v665
        %v1066 = vadd.f32 %v1065, %v668
        %v1067 = vadd.f32 %v1066, %v673
        %v1068 = vadd.f32 %v1067, %v676
        %v1069 = vadd.f32 %v1068, %v681
        %v1070 = vadd.f32 %v1069, %v684
        %v1071 = vadd.f32 %v1070, %v689
        %v1072 = vadd.f32 %v1071, %v692
        %v1073 = vadd.f32 %v1072, %v697
        %v1074 = vadd.f32 %v1073, %v700
        %v1075 = vadd.f32 %v1074, %v705
        %v1076 = vadd.f32 %v1075, %v708
        %1077 = vadd.xlane.f32.xlu0 %v1076
        %v1078 = vpop.xlane.xlu0 %1077
        %v1079 = vrot.slane %v1078, 4
        %v1080 = vadd.f32 %v1078, %v1079
        %v1081 = vrot.slane %v1080, 2
        %v1082 = vadd.f32 %v1080, %v1081
        %v1083 = vrot.slane %v1082, 1
        %v1084 = vadd.f32 %v1082, %v1083
        %s1085 = vtos %v1084
        %s1086 = smul.f32 %s1085, 3.415067e-05
        %1087 = vadd.xlane.f32.xlu0 %v476
        %v1088 = vpop.xlane.xlu0 %1087
        %1089 = vadd.xlane.f32.xlu0 %v479
        %v1090 = vpop.xlane.xlu0 %1089
        %1091 = vadd.xlane.f32.xlu0 %v484
        %v1092 = vpop.xlane.xlu0 %1091
        %1093 = vadd.xlane.f32.xlu0 %v487
        %v1094 = vpop.xlane.xlu0 %1093
        %1095 = vadd.xlane.f32.xlu0 %v492
        %v1096 = vpop.xlane.xlu0 %1095
        %1097 = vadd.xlane.f32.xlu0 %v495
        %v1098 = vpop.xlane.xlu0 %1097
        %1099 = vadd.xlane.f32.xlu0 %v500
        %v1100 = vpop.xlane.xlu0 %1099
        %1101 = vadd.xlane.f32.xlu0 %v503
        %v1102 = vpop.xlane.xlu0 %1101
        %1103 = vadd.xlane.f32.xlu0 %v508
        %v1104 = vpop.xlane.xlu0 %1103
        %1105 = vadd.xlane.f32.xlu0 %v511
        %v1106 = vpop.xlane.xlu0 %1105
        %1107 = vadd.xlane.f32.xlu0 %v516
        %v1108 = vpop.xlane.xlu0 %1107
        %1109 = vadd.xlane.f32.xlu0 %v519
        %v1110 = vpop.xlane.xlu0 %1109
        %1111 = vadd.xlane.f32.xlu0 %v524
        %v1112 = vpop.xlane.xlu0 %1111
        %1113 = vadd.xlane.f32.xlu0 %v527
        %v1114 = vpop.xlane.xlu0 %1113
        %1115 = vadd.xlane.f32.xlu0 %v532
        %v1116 = vpop.xlane.xlu0 %1115
        %1117 = vadd.xlane.f32.xlu0 %v535
        %v1118 = vpop.xlane.xlu0 %1117
        %1119 = vadd.xlane.f32.xlu0 %v649
        %v1120 = vpop.xlane.xlu0 %1119
        %1121 = vadd.xlane.f32.xlu0 %v652
        %v1122 = vpop.xlane.xlu0 %1121
        %1123 = vadd.xlane.f32.xlu0 %v657
        %v1124 = vpop.xlane.xlu0 %1123
        %1125 = vadd.xlane.f32.xlu0 %v660
        %v1126 = vpop.xlane.xlu0 %1125
        %1127 = vadd.xlane.f32.xlu0 %v665
        %v1128 = vpop.xlane.xlu0 %1127
        %1129 = vadd.xlane.f32.xlu0 %v668
        %v1130 = vpop.xlane.xlu0 %1129
        %1131 = vadd.xlane.f32.xlu0 %v673
        %v1132 = vpop.xlane.xlu0 %1131
        %1133 = vadd.xlane.f32.xlu0 %v676
        %v1134 = vpop.xlane.xlu0 %1133
        %1135 = vadd.xlane.f32.xlu0 %v681
        %v1136 = vpop.xlane.xlu0 %1135
        %1137 = vadd.xlane.f32.xlu0 %v684
        %v1138 = vpop.xlane.xlu0 %1137
        %1139 = vadd.xlane.f32.xlu0 %v689
        %v1140 = vpop.xlane.xlu0 %1139
        %1141 = vadd.xlane.f32.xlu0 %v692
        %v1142 = vpop.xlane.xlu0 %1141
        %1143 = vadd.xlane.f32.xlu0 %v697
        %v1144 = vpop.xlane.xlu0 %1143
        %1145 = vadd.xlane.f32.xlu0 %v700
        %v1146 = vpop.xlane.xlu0 %1145
        %1147 = vadd.xlane.f32.xlu0 %v705
        %v1148 = vpop.xlane.xlu0 %1147
        %1149 = vadd.xlane.f32.xlu0 %v708
        %v1150 = vpop.xlane.xlu0 %1149
        %v1151 = vmul.f32 %v1088, 0.008264462
        %v1152 = vmul.f32 %v1090, 0.008264462
        %v1153 = vmul.f32 %v1092, 0.008264462
        %v1154 = vmul.f32 %v1094, 0.008264462
        %v1155 = vmul.f32 %v1096, 0.008264462
        %v1156 = vmul.f32 %v1098, 0.008264462
        %v1157 = vmul.f32 %v1100, 0.008264462
        %v1158 = vmul.f32 %v1102, 0.008264462
        %v1159 = vmul.f32 %v1104, 0.008264462
        %v1160 = vmul.f32 %v1106, 0.008264462
        %v1161 = vmul.f32 %v1108, 0.008264462
        %v1162 = vmul.f32 %v1110, 0.008264462
        %v1163 = vmul.f32 %v1112, 0.008264462
        %v1164 = vmul.f32 %v1114, 0.008264462
        %v1165 = vmul.f32 %v1116, 0.008264462
        %v1166 = vmul.f32 %v1118, 0.008264462
        %v1167 = vmul.f32 %v1120, 0.008264462
        %v1168 = vmul.f32 %v1122, 0.008264462
        %v1169 = vmul.f32 %v1124, 0.008264462
        %v1170 = vmul.f32 %v1126, 0.008264462
        %v1171 = vmul.f32 %v1128, 0.008264462
        %v1172 = vmul.f32 %v1130, 0.008264462
        %v1173 = vmul.f32 %v1132, 0.008264462
        %v1174 = vmul.f32 %v1134, 0.008264462
        %v1175 = vmul.f32 %v1136, 0.008264462
        %v1176 = vmul.f32 %v1138, 0.008264462
        %v1177 = vmul.f32 %v1140, 0.008264462
        %v1178 = vmul.f32 %v1142, 0.008264462
        %v1179 = vmul.f32 %v1144, 0.008264462
        %v1180 = vmul.f32 %v1146, 0.008264462
        %v1181 = vmul.f32 %v1148, 0.008264462
        %v1182 = vmul.f32 %v1150, 0.008264462
        %v1183 = vsub.f32 %v476, %v1151
        %v1184 = vsub.f32 %v479, %v1152
        %v1185 = vsub.f32 %v484, %v1153
        %v1186 = vsub.f32 %v487, %v1154
        %v1187 = vsub.f32 %v492, %v1155
        %v1188 = vsub.f32 %v495, %v1156
        %v1189 = vsub.f32 %v500, %v1157
        %v1190 = vsub.f32 %v503, %v1158
        %v1191 = vsub.f32 %v508, %v1159
        %v1192 = vsub.f32 %v511, %v1160
        %v1193 = vsub.f32 %v516, %v1161
        %v1194 = vsub.f32 %v519, %v1162
        %v1195 = vsub.f32 %v524, %v1163
        %v1196 = vsub.f32 %v527, %v1164
        %v1197 = vsub.f32 %v532, %v1165
        %v1198 = vsub.f32 %v535, %v1166
        %v1199 = vsub.f32 %v649, %v1167
        %v1200 = vsub.f32 %v652, %v1168
        %v1201 = vsub.f32 %v657, %v1169
        %v1202 = vsub.f32 %v660, %v1170
        %v1203 = vsub.f32 %v665, %v1171
        %v1204 = vsub.f32 %v668, %v1172
        %v1205 = vsub.f32 %v673, %v1173
        %v1206 = vsub.f32 %v676, %v1174
        %v1207 = vsub.f32 %v681, %v1175
        %v1208 = vsub.f32 %v684, %v1176
        %v1209 = vsub.f32 %v689, %v1177
        %v1210 = vsub.f32 %v692, %v1178
        %v1211 = vsub.f32 %v697, %v1179
        %v1212 = vsub.f32 %v700, %v1180
        %v1213 = vsub.f32 %v705, %v1181
        %v1214 = vsub.f32 %v708, %v1182
        %v1215 = vstv %s1086
        %v1216 = vadd.f32 %v1183, %v1215
        %v1217 = vadd.f32 %v1184, %v1215
        %v1218 = vadd.f32 %v1185, %v1215
        %v1219 = vadd.f32 %v1186, %v1215
        %v1220 = vadd.f32 %v1187, %v1215
        %v1221 = vadd.f32 %v1188, %v1215
        %v1222 = vadd.f32 %v1189, %v1215
        %v1223 = vadd.f32 %v1190, %v1215
        %v1224 = vadd.f32 %v1191, %v1215
        %v1225 = vadd.f32 %v1192, %v1215
        %v1226 = vadd.f32 %v1193, %v1215
        %v1227 = vadd.f32 %v1194, %v1215
        %v1228 = vadd.f32 %v1195, %v1215
        %v1229 = vadd.f32 %v1196, %v1215
        %v1230 = vadd.f32 %v1197, %v1215
        %v1231 = vadd.f32 %v1198, %v1215
        %v1232 = vadd.f32 %v1199, %v1215
        %v1233 = vadd.f32 %v1200, %v1215
        %v1234 = vadd.f32 %v1201, %v1215
        %v1235 = vadd.f32 %v1202, %v1215
        %v1236 = vadd.f32 %v1203, %v1215
        %v1237 = vadd.f32 %v1204, %v1215
        %v1238 = vadd.f32 %v1205, %v1215
        %v1239 = vadd.f32 %v1206, %v1215
        %v1240 = vadd.f32 %v1207, %v1215
        %v1241 = vadd.f32 %v1208, %v1215
        %v1242 = vadd.f32 %v1209, %v1215
        %v1243 = vadd.f32 %v1210, %v1215
        %v1244 = vadd.f32 %v1211, %v1215
        %v1245 = vadd.f32 %v1212, %v1215
        %v1246 = vadd.f32 %v1213, %v1215
        %v1247 = vadd.f32 %v1214, %v1215
        %v1248 = vmax.f32 %v817, 0.0
        %v1249 = vmax.f32 %v820, 0.0
        %v1250 = vmax.f32 %v825, 0.0
        %v1251 = vmax.f32 %v828, 0.0
        %v1252 = vmax.f32 %v833, 0.0
        %v1253 = vmax.f32 %v836, 0.0
        %v1254 = vmax.f32 %v841, 0.0
        %v1255 = vmax.f32 %v844, 0.0
        %v1256 = vmax.f32 %v849, 0.0
        %v1257 = vmax.f32 %v852, 0.0
        %v1258 = vmax.f32 %v857, 0.0
        %v1259 = vmax.f32 %v860, 0.0
        %v1260 = vmax.f32 %v865, 0.0
        %v1261 = vmax.f32 %v868, 0.0
        %v1262 = vmax.f32 %v873, 0.0
        %v1263 = vmax.f32 %v876, 0.0
        %v1264 = vmax.f32 %v984, 0.0
        %v1265 = vmax.f32 %v987, 0.0
        %v1266 = vmax.f32 %v992, 0.0
        %v1267 = vmax.f32 %v995, 0.0
        %v1268 = vmax.f32 %v1000, 0.0
        %v1269 = vmax.f32 %v1003, 0.0
        %v1270 = vmax.f32 %v1008, 0.0
        %v1271 = vmax.f32 %v1011, 0.0
        %v1272 = vmax.f32 %v1016, 0.0
        %v1273 = vmax.f32 %v1019, 0.0
        %v1274 = vmax.f32 %v1024, 0.0
        %v1275 = vmax.f32 %v1027, 0.0
        %v1276 = vmax.f32 %v1032, 0.0
        %v1277 = vmax.f32 %v1035, 0.0
        %v1278 = vmax.f32 %v1040, 0.0
        %v1279 = vmax.f32 %v1043, 0.0
        %v1280 = vsub.f32 0.0, %v1248
        %v1281 = vsub.f32 0.0, %v1249
        %v1282 = vsub.f32 0.0, %v1250
        %v1283 = vsub.f32 0.0, %v1251
        %v1284 = vsub.f32 0.0, %v1252
        %v1285 = vsub.f32 0.0, %v1253
        %v1286 = vsub.f32 0.0, %v1254
        %v1287 = vsub.f32 0.0, %v1255
        %v1288 = vsub.f32 0.0, %v1256
        %v1289 = vsub.f32 0.0, %v1257
        %v1290 = vsub.f32 0.0, %v1258
        %v1291 = vsub.f32 0.0, %v1259
        %v1292 = vsub.f32 0.0, %v1260
        %v1293 = vsub.f32 0.0, %v1261
        %v1294 = vsub.f32 0.0, %v1262
        %v1295 = vsub.f32 0.0, %v1263
        %v1296 = vsub.f32 0.0, %v1264
        %v1297 = vsub.f32 0.0, %v1265
        %v1298 = vsub.f32 0.0, %v1266
        %v1299 = vsub.f32 0.0, %v1267
        %v1300 = vsub.f32 0.0, %v1268
        %v1301 = vsub.f32 0.0, %v1269
        %v1302 = vsub.f32 0.0, %v1270
        %v1303 = vsub.f32 0.0, %v1271
        %v1304 = vsub.f32 0.0, %v1272
        %v1305 = vsub.f32 0.0, %v1273
        %v1306 = vsub.f32 0.0, %v1274
        %v1307 = vsub.f32 0.0, %v1275
        %v1308 = vsub.f32 0.0, %v1276
        %v1309 = vsub.f32 0.0, %v1277
        %v1310 = vsub.f32 0.0, %v1278
        %v1311 = vsub.f32 0.0, %v1279
        %v1312 = vstv %s287
        %v1313 = vsub.f32 %v1216, %v1312
        %v1314 = vsub.f32 %v1217, %v1312
        %v1315 = vsub.f32 %v1218, %v1312
        %v1316 = vsub.f32 %v1219, %v1312
        %v1317 = vsub.f32 %v1220, %v1312
        %v1318 = vsub.f32 %v1221, %v1312
        %v1319 = vsub.f32 %v1222, %v1312
        %v1320 = vsub.f32 %v1223, %v1312
        %v1321 = vsub.f32 %v1224, %v1312
        %v1322 = vsub.f32 %v1225, %v1312
        %v1323 = vsub.f32 %v1226, %v1312
        %v1324 = vsub.f32 %v1227, %v1312
        %v1325 = vsub.f32 %v1228, %v1312
        %v1326 = vsub.f32 %v1229, %v1312
        %v1327 = vsub.f32 %v1230, %v1312
        %v1328 = vsub.f32 %v1231, %v1312
        %v1329 = vsub.f32 %v1232, %v1312
        %v1330 = vsub.f32 %v1233, %v1312
        %v1331 = vsub.f32 %v1234, %v1312
        %v1332 = vsub.f32 %v1235, %v1312
        %v1333 = vsub.f32 %v1236, %v1312
        %v1334 = vsub.f32 %v1237, %v1312
        %v1335 = vsub.f32 %v1238, %v1312
        %v1336 = vsub.f32 %v1239, %v1312
        %v1337 = vsub.f32 %v1240, %v1312
        %v1338 = vsub.f32 %v1241, %v1312
        %v1339 = vsub.f32 %v1242, %v1312
        %v1340 = vsub.f32 %v1243, %v1312
        %v1341 = vsub.f32 %v1244, %v1312
        %v1342 = vsub.f32 %v1245, %v1312
        %v1343 = vsub.f32 %v1246, %v1312
        %v1344 = vsub.f32 %v1247, %v1312
        %v1345 = vmul.f32 %v1280, %v1313
        %v1346 = vmul.f32 %v1281, %v1314
        %v1347 = vmul.f32 %v1282, %v1315
        %v1348 = vmul.f32 %v1283, %v1316
        %v1349 = vmul.f32 %v1284, %v1317
        %v1350 = vmul.f32 %v1285, %v1318
        %v1351 = vmul.f32 %v1286, %v1319
        %v1352 = vmul.f32 %v1287, %v1320
        %v1353 = vmul.f32 %v1288, %v1321
        %v1354 = vmul.f32 %v1289, %v1322
        %v1355 = vmul.f32 %v1290, %v1323
        %v1356 = vmul.f32 %v1291, %v1324
        %v1357 = vmul.f32 %v1292, %v1325
        %v1358 = vmul.f32 %v1293, %v1326
        %v1359 = vmul.f32 %v1294, %v1327
        %v1360 = vmul.f32 %v1295, %v1328
        %v1361 = vmul.f32 %v1296, %v1329
        %v1362 = vmul.f32 %v1297, %v1330
        %v1363 = vmul.f32 %v1298, %v1331
        %v1364 = vmul.f32 %v1299, %v1332
        %v1365 = vmul.f32 %v1300, %v1333
        %v1366 = vmul.f32 %v1301, %v1334
        %v1367 = vmul.f32 %v1302, %v1335
        %v1368 = vmul.f32 %v1303, %v1336
        %v1369 = vmul.f32 %v1304, %v1337
        %v1370 = vmul.f32 %v1305, %v1338
        %v1371 = vmul.f32 %v1306, %v1339
        %v1372 = vmul.f32 %v1307, %v1340
        %v1373 = vmul.f32 %v1308, %v1341
        %v1374 = vmul.f32 %v1309, %v1342
        %v1375 = vmul.f32 %v1310, %v1343
        %v1376 = vmul.f32 %v1311, %v1344
        %1377 = vst [vmem:[%s261] sm:$0xff] %v1345
        %1378 = vst [vmem:[%s261 + $0x8] sm:$0xff] %v1346
        %1379 = vst [vmem:[%s261 + $0x10] sm:$0xff] %v1347
        %1380 = vst [vmem:[%s261 + $0x18] sm:$0xff] %v1348
        %1381 = vst [vmem:[%s261 + $0x20] sm:$0xff] %v1349
        %1382 = vst [vmem:[%s261 + $0x28] sm:$0xff] %v1350
        %1383 = vst [vmem:[%s261 + $0x30] sm:$0xff] %v1351
        %1384 = vst [vmem:[%s261 + $0x38] sm:$0xff] %v1352
        %1385 = vst [vmem:[%s261 + $0x40] sm:$0xff] %v1353
        %1386 = vst [vmem:[%s261 + $0x48] sm:$0xff] %v1354
        %1387 = vst [vmem:[%s261 + $0x50] sm:$0xff] %v1355
        %1388 = vst [vmem:[%s261 + $0x58] sm:$0xff] %v1356
        %1389 = vst [vmem:[%s261 + $0x60] sm:$0xff] %v1357
        %1390 = vst [vmem:[%s261 + $0x68] sm:$0xff] %v1358
        %1391 = vst [vmem:[%s261 + $0x70] sm:$0xff] %v1359
        %1392 = vst [vmem:[%s261 + $0x78] sm:$0xff] %v1360
        %1393 = vst [vmem:[%s261 + $0x80] sm:$0xff] %v1361
        %1394 = vst [vmem:[%s261 + $0x88] sm:$0xff] %v1362
        %1395 = vst [vmem:[%s261 + $0x90] sm:$0xff] %v1363
        %1396 = vst [vmem:[%s261 + $0x98] sm:$0xff] %v1364
        %1397 = vst [vmem:[%s261 + $0xa0] sm:$0xff] %v1365
        %1398 = vst [vmem:[%s261 + $0xa8] sm:$0xff] %v1366
        %1399 = vst [vmem:[%s261 + $0xb0] sm:$0xff] %v1367
        %1400 = vst [vmem:[%s261 + $0xb8] sm:$0xff] %v1368
        %1401 = vst [vmem:[%s261 + $0xc0] sm:$0xff] %v1369
        %1402 = vst [vmem:[%s261 + $0xc8] sm:$0xff] %v1370
        %1403 = vst [vmem:[%s261 + $0xd0] sm:$0xff] %v1371
        %1404 = vst [vmem:[%s261 + $0xd8] sm:$0xff] %v1372
        %1405 = vst [vmem:[%s261 + $0xe0] sm:$0xff] %v1373
        %1406 = vst [vmem:[%s261 + $0xe8] sm:$0xff] %v1374
        %1407 = vst [vmem:[%s261 + $0xf0] sm:$0xff] %v1375
        %1408 = vst [vmem:[%s261 + $0xf8] sm:$0xff] %v1376
        %1409 = vst [vmem:[%s268] sm:$0xff] %v817
        %1410 = vst [vmem:[%s268 + $0x8] sm:$0xff] %v820
        %1411 = vst [vmem:[%s268 + $0x10] sm:$0xff] %v825
        %1412 = vst [vmem:[%s268 + $0x18] sm:$0xff] %v828
        %1413 = vst [vmem:[%s268 + $0x20] sm:$0xff] %v833
        %1414 = vst [vmem:[%s268 + $0x28] sm:$0xff] %v836
        %1415 = vst [vmem:[%s268 + $0x30] sm:$0xff] %v841
        %1416 = vst [vmem:[%s268 + $0x38] sm:$0xff] %v844
        %1417 = vst [vmem:[%s268 + $0x40] sm:$0xff] %v849
        %1418 = vst [vmem:[%s268 + $0x48] sm:$0xff] %v852
        %1419 = vst [vmem:[%s268 + $0x50] sm:$0xff] %v857
        %1420 = vst [vmem:[%s268 + $0x58] sm:$0xff] %v860
        %1421 = vst [vmem:[%s268 + $0x60] sm:$0xff] %v865
        %1422 = vst [vmem:[%s268 + $0x68] sm:$0xff] %v868
        %1423 = vst [vmem:[%s268 + $0x70] sm:$0xff] %v873
        %1424 = vst [vmem:[%s268 + $0x78] sm:$0xff] %v876
        %1425 = vst [vmem:[%s268 + $0x80] sm:$0xff] %v984
        %1426 = vst [vmem:[%s268 + $0x88] sm:$0xff] %v987
        %1427 = vst [vmem:[%s268 + $0x90] sm:$0xff] %v992
        %1428 = vst [vmem:[%s268 + $0x98] sm:$0xff] %v995
        %1429 = vst [vmem:[%s268 + $0xa0] sm:$0xff] %v1000
        %1430 = vst [vmem:[%s268 + $0xa8] sm:$0xff] %v1003
        %1431 = vst [vmem:[%s268 + $0xb0] sm:$0xff] %v1008
        %1432 = vst [vmem:[%s268 + $0xb8] sm:$0xff] %v1011
        %1433 = vst [vmem:[%s268 + $0xc0] sm:$0xff] %v1016
        %1434 = vst [vmem:[%s268 + $0xc8] sm:$0xff] %v1019
        %1435 = vst [vmem:[%s268 + $0xd0] sm:$0xff] %v1024
        %1436 = vst [vmem:[%s268 + $0xd8] sm:$0xff] %v1027
        %1437 = vst [vmem:[%s268 + $0xe0] sm:$0xff] %v1032
        %1438 = vst [vmem:[%s268 + $0xe8] sm:$0xff] %v1035
        %1439 = vst [vmem:[%s268 + $0xf0] sm:$0xff] %v1040
        %1440 = vst [vmem:[%s268 + $0xf8] sm:$0xff] %v1043
        %s1441 = sand.u32 %s128, 1
        %s1442 = scalar_lea.sflag [#allocation4], %s1441
        %s1443 = sand.u32 %s128, 1
        %s1444 = smul.addr %s1443, 256
        %s1445 = scalar_lea.vmem [#allocation5], %s1444
        %s1446 = sand.u32 %s154, 1
        %s1447 = scalar_lea.sflag [#allocation7], %s1446
        %s1448 = sand.u32 %s154, 1
        %s1449 = smul.addr %s1448, 256
        %s1450 = scalar_lea.vmem [#allocation6], %s1449
        // Predicated region
        $region41: #{tpu_custom_call.1} parent=35 // pred_check
          %p1451 = pneg %p138
        $region42: #{tpu_custom_call.1} parent=35 // pred_check_branch
          %1453 = sbr.rel (%p1451) target = $region44
        $region43: #{tpu_custom_call.1} parent=35 // pred_region
          %s1455 = ssub.s32 4096, 4096
          %1456 = vsyncadd %s1442, %s1455
          %s1457 = smul.addr %s26, 32
          %s1458 = smul.addr %s1457, 128
          %s1459 = scalar_lea.hbm %s4, %s1458
          %s1460 = sshll.u32 %s1445, 4
          %s1461 = int_to_ptr.vmem [resolvable:$true] %s1460
          %1466 = dma.vmem_to_hbm [thread:$0]  %s1461, 4096, %s1459, %s1442, 128, 128, 8
        $region44: #{tpu_custom_call.1} parent=35 // pred_fallthru
          _
        // Predicated region
        $region45: #{tpu_custom_call.1} parent=35 // pred_check
          %p1467 = pneg %p164
        $region46: #{tpu_custom_call.1} parent=35 // pred_check_branch
          %1469 = sbr.rel (%p1467) target = $region48
        $region47: #{tpu_custom_call.1} parent=35 // pred_region
          %s1471 = ssub.s32 4096, 4096
          %1472 = vsyncadd %s1447, %s1471
          %s1473 = smul.addr %s26, 32
          %s1474 = smul.addr %s1473, 128
          %s1475 = scalar_lea.hbm %s5, %s1474
          %s1476 = sshll.u32 %s1450, 4
          %s1477 = int_to_ptr.vmem [resolvable:$true] %s1476
          %1482 = dma.vmem_to_hbm [thread:$0]  %s1477, 4096, %s1475, %s1447, 128, 128, 8
        $region48: #{tpu_custom_call.1} parent=35 // pred_fallthru
          _
      $region36: #{tpu_custom_call.1} parent=5 // pred_fallthru
        _
      %p1483 = scmp.le.s32.totalorder 2, %s21
      // Predicated region
      $region49: #{tpu_custom_call.1} parent=5 // pred_check
        %p1484 = pneg %p1483
      $region50: #{tpu_custom_call.1} parent=5 // pred_check_branch
        %1486 = sbr.rel (%p1484) target = $region52
      $region51: #{tpu_custom_call.1} parent=5 // pred_region
        %s1487 = ssub.s32 %s21, 2
        // Predicated region
        $region53: #{tpu_custom_call.1} parent=51 // pred_check
          %p1488 = pneg %p144
        $region54: #{tpu_custom_call.1} parent=51 // pred_check_branch
          %1490 = sbr.rel (%p1488) target = $region56
        $region55: #{tpu_custom_call.1} parent=51 // pred_region
          %s1491 = sand.u32 %s129, 1
          %s1492 = scalar_lea.sflag [#allocation4], %s1491
          %s1493 = sand.u32 %s129, 1
          %s1494 = smul.addr %s1493, 256
          %s1495 = scalar_lea.vmem [#allocation5], %s1494
          %1496 = dma.done %s1492, 4096
        $region56: #{tpu_custom_call.1} parent=51 // pred_fallthru
          _
        // Predicated region
        $region57: #{tpu_custom_call.1} parent=51 // pred_check
          %p1497 = pneg %p170
        $region58: #{tpu_custom_call.1} parent=51 // pred_check_branch
          %1499 = sbr.rel (%p1497) target = $region60
        $region59: #{tpu_custom_call.1} parent=51 // pred_region
          %s1500 = sand.u32 %s155, 1
          %s1501 = scalar_lea.sflag [#allocation7], %s1500
          %s1502 = sand.u32 %s155, 1
          %s1503 = smul.addr %s1502, 256
          %s1504 = scalar_lea.vmem [#allocation6], %s1503
          %1505 = dma.done %s1501, 4096
        $region60: #{tpu_custom_call.1} parent=51 // pred_fallthru
          _
      $region52: #{tpu_custom_call.1} parent=5 // pred_fallthru
        _
    $region6: #{tpu_custom_call.1} parent=1 // loop_footer
      %s25 = sadd.s32 1, %s21
    $region7: #{tpu_custom_call.1} parent=1 // loop_footer_branch
      %20 = sbr.rel target = $region3
    $region8: #{tpu_custom_call.1} parent=1 // loop_exit
      _
    %1506 = vsyncpa [#allocation3], 1
    %s1507 = scalar_lea.sflag [#allocation3], 1
    %1508 = vsyncpa %s1507, 1
    %1509 = vsyncpa [#allocation4], 1
    %s1510 = scalar_lea.sflag [#allocation4], 1
    %1511 = vsyncpa %s1510, 1
    %1512 = vsyncpa [#allocation7], 1
    %s1513 = scalar_lea.sflag [#allocation7], 1
    %1514 = vsyncpa %s1513, 1

</llo_original>
